<compile_context>
chip_gen: v6e
topology: v6e:2x2x1
jax: 0.10.0
libtpu: 0.0.40
codegen_flags: <defaults>
</compile_context>

<pallas_src>
import functools

import jax
import jax.numpy as jnp
from jax.experimental import pallas as pl
from jax.experimental.pallas import tpu as pltpu

IN_DIM = 784
IN_PAD = 896           # 7 * 128  (lane-aligned K for the first matmul)
H1 = 128
H2 = 64
H2_PAD = 128           # lane-dense hidden-2 (padded cols are exactly 0)
OUT_DIM = 10
OUT_PAD = 128          # lane-dense output block
NEG_BIG = -1e30        # bias for padded classes -> exp underflows to exactly 0


def _round_up(x, m):
    return ((x + m - 1) // m) * m


def mlp_kernel(x_ref, w1_ref, b1_ref, w2_ref, b2_ref, w3_ref, b3_ref, o_ref):
    # x_ref: (tile, IN_PAD) bf16; weights bf16; biases f32; output f32.
    x = x_ref[...]

    # Linear(784 -> 128) + ReLU: bf16 MXU matmul, f32 accumulation, f32 epilogue.
    h1 = jnp.dot(x, w1_ref[...], preferred_element_type=jnp.float32)
    h1 = jnp.maximum(h1 + b1_ref[...], 0.0)

    # Linear(128 -> 64, padded to 128) + ReLU. Padded columns = ReLU(0+0) = 0.
    h2 = jnp.dot(h1.astype(jnp.bfloat16), w2_ref[...],
                 preferred_element_type=jnp.float32)
    h2 = jnp.maximum(h2 + b2_ref[...], 0.0)

    # Linear(64 -> 10), K padded to 128 (zero rows), classes padded to 128.
    logits = jnp.dot(h2.astype(jnp.bfloat16), w3_ref[...],
                     preferred_element_type=jnp.float32)
    logits = logits + b3_ref[...]

    # LogSoftmax(dim=1), numerically stable. Padded classes contribute
    # exp(NEG_BIG - m) == 0, so columns 0..9 are exact.
    m = jnp.max(logits, axis=1, keepdims=True)
    shifted = logits - m
    lse = jnp.log(jnp.sum(jnp.exp(shifted), axis=1, keepdims=True))
    o_ref[...] = (shifted - lse).astype(o_ref.dtype)


@functools.partial(jax.jit, static_argnames=("batch_tile",))
def mlp_forward(x, params, batch_tile=1024):
    """x: (B, 1, 28, 28) or (B, 784). Returns (B, 10) f32 log-probabilities."""
    w1, b1, w2, b2, w3, b3 = params
    x2d = x.reshape(x.shape[0], -1).astype(jnp.float32)   # torch.nn.Flatten()
    B = x2d.shape[0]

    # --- Pad to lane-dense shapes: 784 -> 896, 64 -> 128, 10 -> 128 ---
    x2d = jnp.pad(x2d, ((0, 0), (0, IN_PAD - IN_DIM)))
    w1p = jnp.pad(w1, ((0, IN_PAD - IN_DIM), (0, 0)))
    w2p = jnp.pad(w2, ((0, 0), (0, H2_PAD - H2)))
    b2p = jnp.pad(b2, ((0, 0), (0, H2_PAD - H2)))                        # zeros
    w3p = jnp.pad(w3, ((0, H2_PAD - H2), (0, OUT_PAD - OUT_DIM)))        # zeros
    b3p = jnp.pad(b3, ((0, 0), (0, OUT_PAD - OUT_DIM)),
                  constant_values=NEG_BIG)

    # Matmul operands in bf16 (halves x HBM bytes, native MXU rate); biases f32.
    xb = x2d.astype(jnp.bfloat16)
    w1b = w1p.astype(jnp.bfloat16)
    w2b = w2p.astype(jnp.bfloat16)
    w3b = w3p.astype(jnp.bfloat16)

    # --- Choose batch tile; pad batch to a multiple of it (no divisibility assert) ---
    Bp = _round_up(B, 128)
    tile = min(batch_tile, Bp)
    if Bp >= 2 * 128:
        # Keep >= 2 grid steps so the "parallel" axis can split across v7x's 2 TCs.
        tile = min(tile, (Bp // 2 // 128) * 128)
    Bp = _round_up(Bp, tile)
    if Bp != B:
        xb = jnp.pad(xb, ((0, Bp - B), (0, 0)))
    grid = (Bp // tile,)

    const2d = lambda shape: pl.BlockSpec(shape, lambda i: (0, 0))

    out = pl.pallas_call(
        mlp_kernel,
        out_shape=jax.ShapeDtypeStruct((Bp, OUT_PAD), jnp.float32),
        grid_spec=pltpu.PrefetchScalarGridSpec(
            num_scalar_prefetch=0,
            grid=grid,
            in_specs=[
                pl.BlockSpec((tile, IN_PAD), lambda i: (i, 0)),
                const2d((IN_PAD, H1)),
                const2d((1, H1)),
                const2d((H1, H2_PAD)),
                const2d((1, H2_PAD)),
                const2d((H2_PAD, OUT_PAD)),
                const2d((1, OUT_PAD)),
            ],
            out_specs=pl.BlockSpec((tile, OUT_PAD), lambda i: (i, 0)),
        ),
        compiler_params=pltpu.CompilerParams(
            dimension_semantics=("parallel",),
            vmem_limit_bytes=32 * 1024 * 1024,
        ),
    )(xb, w1b, b1, w2b, b2p, w3b, b3p)

    return out[:B, :OUT_DIM]


def init_params(key):
    """Deterministic init mirroring torch.nn.Linear default (U[-1/sqrt(fan_in), ...])."""
    ks = jax.random.split(key, 6)

    def linear(kw, kb, fan_in, fan_out):
        bound = 1.0 / jnp.sqrt(fan_in)
        w = jax.random.uniform(kw, (fan_in, fan_out), jnp.float32, -bound, bound)
        b = jax.random.uniform(kb, (1, fan_out), jnp.float32, -bound, bound)
        return w, b

    w1, b1 = linear(ks[0], ks[1], IN_DIM, H1)
    w2, b2 = linear(ks[2], ks[3], H1, H2)
    w3, b3 = linear(ks[4], ks[5], H2, OUT_DIM)
    return (w1, b1, w2, b2, w3, b3)


def reference_forward_f32(x, params):
    """Pure-f32 JAX reference (matches the PyTorch module semantics)."""
    w1, b1, w2, b2, w3, b3 = params
    x2d = x.reshape(x.shape[0], -1)
    h1 = jnp.maximum(x2d @ w1 + b1, 0.0)
    h2 = jnp.maximum(h1 @ w2 + b2, 0.0)
    logits = h2 @ w3 + b3
    return jax.nn.log_softmax(logits, axis=1)


def reference_forward_bf16(x, params):
    """Reference mirroring the kernel's dtype strategy (bf16 operands, f32 acc)."""
    w1, b1, w2, b2, w3, b3 = params
    x2d = x.reshape(x.shape[0], -1).astype(jnp.bfloat16)
    h1 = jnp.maximum(jnp.dot(x2d, w1.astype(jnp.bfloat16),
                             preferred_element_type=jnp.float32) + b1, 0.0)
    h2 = jnp.maximum(jnp.dot(h1.astype(jnp.bfloat16), w2.astype(jnp.bfloat16),
                             preferred_element_type=jnp.float32) + b2, 0.0)
    logits = jnp.dot(h2.astype(jnp.bfloat16), w3.astype(jnp.bfloat16),
                     preferred_element_type=jnp.float32) + b3
    return jax.nn.log_softmax(logits, axis=1)


if __name__ == "__main__":
    key = jax.random.PRNGKey(0)
    k_x, k_p = jax.random.split(key)

    batch = 8
    x = jax.random.normal(k_x, (batch, 1, 28, 28), dtype=jnp.float32)
    params = init_params(k_p)

    out = mlp_forward(x, params)
    out = jax.block_until_ready(out)
    assert out.shape == (batch, OUT_DIM)

    ref_bf16 = reference_forward_bf16(x, params)   # same dtype strategy -> tight
    ref_f32 = reference_forward_f32(x, params)     # full-precision sanity check
    assert jnp.allclose(out, ref_bf16, atol=2e-3, rtol=0), "mismatch vs bf16 reference"
    assert jnp.allclose(out, ref_f32, atol=6e-2, rtol=0), "mismatch vs f32 reference"

    print("KERNEL_OK")
</pallas_src>

<mosaic_0001>
module attributes {stable_mosaic.version = 11 : i64} {
  func.func @mlp_kernel(%arg0: i32, %arg1: memref<128x896xbf16, #tpu.memory_space<vmem>>, %arg2: memref<896x128xbf16, #tpu.memory_space<vmem>>, %arg3: memref<1x128xf32, #tpu.memory_space<vmem>>, %arg4: memref<128x128xbf16, #tpu.memory_space<vmem>>, %arg5: memref<1x128xf32, #tpu.memory_space<vmem>>, %arg6: memref<128x128xbf16, #tpu.memory_space<vmem>>, %arg7: memref<1x128xf32, #tpu.memory_space<vmem>>, %arg8: memref<128x128xf32, #tpu.memory_space<vmem>>) attributes {dimension_semantics = [#tpu.dimension_semantics<parallel>], iteration_bounds = array<i64: 1>, scalar_prefetch = 0 : i64, scratch_operands = 0 : i64, tpu.core_type = #tpu.core_type<tc>, window_params = [{transform_indices = @transform_0, window_bounds = array<i64: 128, 896>}, {pipeline_mode = #tpu.pipeline_mode<synchronous>, transform_indices = @transform_1, window_bounds = array<i64: 896, 128>}, {pipeline_mode = #tpu.pipeline_mode<synchronous>, transform_indices = @transform_2, window_bounds = array<i64: 1, 128>}, {pipeline_mode = #tpu.pipeline_mode<synchronous>, transform_indices = @transform_3, window_bounds = array<i64: 128, 128>}, {pipeline_mode = #tpu.pipeline_mode<synchronous>, transform_indices = @transform_4, window_bounds = array<i64: 1, 128>}, {pipeline_mode = #tpu.pipeline_mode<synchronous>, transform_indices = @transform_5, window_bounds = array<i64: 128, 128>}, {pipeline_mode = #tpu.pipeline_mode<synchronous>, transform_indices = @transform_6, window_bounds = array<i64: 1, 128>}, {transform_indices = @transform_7, window_bounds = array<i64: 128, 128>}]} {
    %c0 = arith.constant 0 : index
    %c0_0 = arith.constant 0 : index
    %0 = vector.load %arg1[%c0, %c0_0] : memref<128x896xbf16, #tpu.memory_space<vmem>>, vector<128x896xbf16>
    %c0_1 = arith.constant 0 : index
    %c0_2 = arith.constant 0 : index
    %1 = vector.load %arg2[%c0_1, %c0_2] : memref<896x128xbf16, #tpu.memory_space<vmem>>, vector<896x128xbf16>
    %cst = arith.constant dense<0.000000e+00> : vector<128x128xf32>
    %2 = tpu.matmul %0, %1, %cst {dimension_numbers = #tpu.dot_dimension_numbers<[1], [0], [0], [1], [0, 0, 1, 1], [], []>} : vector<128x896xbf16>, vector<896x128xbf16>, vector<128x128xf32> -> vector<128x128xf32>
    %c0_3 = arith.constant 0 : index
    %c0_4 = arith.constant 0 : index
    %3 = vector.load %arg3[%c0_3, %c0_4] : memref<1x128xf32, #tpu.memory_space<vmem>>, vector<1x128xf32>
    %4 = vector.broadcast %3 : vector<1x128xf32> to vector<128x128xf32>
    %5 = arith.addf %2, %4 : vector<128x128xf32>
    %cst_5 = arith.constant 0.000000e+00 : f32
    %6 = vector.broadcast %cst_5 : f32 to vector<128x128xf32>
    %7 = arith.maximumf %5, %6 : vector<128x128xf32>
    %8 = arith.truncf %7 : vector<128x128xf32> to vector<128x128xbf16>
    %c0_6 = arith.constant 0 : index
    %c0_7 = arith.constant 0 : index
    %9 = vector.load %arg4[%c0_6, %c0_7] : memref<128x128xbf16, #tpu.memory_space<vmem>>, vector<128x128xbf16>
    %cst_8 = arith.constant dense<0.000000e+00> : vector<128x128xf32>
    %10 = tpu.matmul %8, %9, %cst_8 {dimension_numbers = #tpu.dot_dimension_numbers<[1], [0], [0], [1], [0, 0, 1, 1], [], []>} : vector<128x128xbf16>, vector<128x128xbf16>, vector<128x128xf32> -> vector<128x128xf32>
    %c0_9 = arith.constant 0 : index
    %c0_10 = arith.constant 0 : index
    %11 = vector.load %arg5[%c0_9, %c0_10] : memref<1x128xf32, #tpu.memory_space<vmem>>, vector<1x128xf32>
    %12 = vector.broadcast %11 : vector<1x128xf32> to vector<128x128xf32>
    %13 = arith.addf %10, %12 : vector<128x128xf32>
    %cst_11 = arith.constant 0.000000e+00 : f32
    %14 = vector.broadcast %cst_11 : f32 to vector<128x128xf32>
    %15 = arith.maximumf %13, %14 : vector<128x128xf32>
    %16 = arith.truncf %15 : vector<128x128xf32> to vector<128x128xbf16>
    %c0_12 = arith.constant 0 : index
    %c0_13 = arith.constant 0 : index
    %17 = vector.load %arg6[%c0_12, %c0_13] : memref<128x128xbf16, #tpu.memory_space<vmem>>, vector<128x128xbf16>
    %cst_14 = arith.constant dense<0.000000e+00> : vector<128x128xf32>
    %18 = tpu.matmul %16, %17, %cst_14 {dimension_numbers = #tpu.dot_dimension_numbers<[1], [0], [0], [1], [0, 0, 1, 1], [], []>} : vector<128x128xbf16>, vector<128x128xbf16>, vector<128x128xf32> -> vector<128x128xf32>
    %c0_15 = arith.constant 0 : index
    %c0_16 = arith.constant 0 : index
    %19 = vector.load %arg7[%c0_15, %c0_16] : memref<1x128xf32, #tpu.memory_space<vmem>>, vector<1x128xf32>
    %20 = vector.broadcast %19 : vector<1x128xf32> to vector<128x128xf32>
    %21 = arith.addf %18, %20 : vector<128x128xf32>
    %cst_17 = arith.constant dense<0xFF800000> : vector<128xf32>
    %22 = vector.multi_reduction <maximumf>, %21, %cst_17 [1] : vector<128x128xf32> to vector<128xf32>
    %23 = vector.shape_cast %22 : vector<128xf32> to vector<128x1xf32>
    %24 = vector.broadcast %23 : vector<128x1xf32> to vector<128x128xf32>
    %25 = arith.subf %21, %24 : vector<128x128xf32>
    %26 = math.exp %25 : vector<128x128xf32>
    %cst_18 = arith.constant dense<0.000000e+00> : vector<128xf32>
    %27 = vector.multi_reduction <add>, %26, %cst_18 [1] : vector<128x128xf32> to vector<128xf32>
    %28 = vector.shape_cast %27 : vector<128xf32> to vector<128x1xf32>
    %29 = math.log %28 : vector<128x1xf32>
    %30 = vector.broadcast %29 : vector<128x1xf32> to vector<128x128xf32>
    %31 = arith.subf %25, %30 : vector<128x128xf32>
    %c0_19 = arith.constant 0 : index
    %c0_20 = arith.constant 0 : index
    %32 = vector.load %arg8[%c0_19, %c0_20] : memref<128x128xf32, #tpu.memory_space<vmem>>, vector<128x128xf32>
    tpu.vector_store %arg8[%c0_19, %c0_20], %31 {strides = array<i32>} : memref<128x128xf32, #tpu.memory_space<vmem>>, vector<128x128xf32>,
    return
  }
  func.func @transform_0(%arg0: i32) -> (i32, i32) {
    %c0_i32 = arith.constant 0 : i32
    %c0_i32_0 = arith.constant 0 : i32
    return %arg0, %c0_i32 : i32, i32
  }
  func.func @transform_1(%arg0: i32) -> (i32, i32) {
    %c0_i32 = arith.constant 0 : i32
    %c0_i32_0 = arith.constant 0 : i32
    %c0_i32_1 = arith.constant 0 : i32
    return %c0_i32, %c0_i32_0 : i32, i32
  }
  func.func @transform_2(%arg0: i32) -> (i32, i32) {
    %c0_i32 = arith.constant 0 : i32
    %c0_i32_0 = arith.constant 0 : i32
    %c0_i32_1 = arith.constant 0 : i32
    return %c0_i32, %c0_i32_0 : i32, i32
  }
  func.func @transform_3(%arg0: i32) -> (i32, i32) {
    %c0_i32 = arith.constant 0 : i32
    %c0_i32_0 = arith.constant 0 : i32
    %c0_i32_1 = arith.constant 0 : i32
    return %c0_i32, %c0_i32_0 : i32, i32
  }
  func.func @transform_4(%arg0: i32) -> (i32, i32) {
    %c0_i32 = arith.constant 0 : i32
    %c0_i32_0 = arith.constant 0 : i32
    %c0_i32_1 = arith.constant 0 : i32
    return %c0_i32, %c0_i32_0 : i32, i32
  }
  func.func @transform_5(%arg0: i32) -> (i32, i32) {
    %c0_i32 = arith.constant 0 : i32
    %c0_i32_0 = arith.constant 0 : i32
    %c0_i32_1 = arith.constant 0 : i32
    return %c0_i32, %c0_i32_0 : i32, i32
  }
  func.func @transform_6(%arg0: i32) -> (i32, i32) {
    %c0_i32 = arith.constant 0 : i32
    %c0_i32_0 = arith.constant 0 : i32
    %c0_i32_1 = arith.constant 0 : i32
    return %c0_i32, %c0_i32_0 : i32, i32
  }
  func.func @transform_7(%arg0: i32) -> (i32, i32) {
    %c0_i32 = arith.constant 0 : i32
    %c0_i32_0 = arith.constant 0 : i32
    return %arg0, %c0_i32 : i32, i32
  }
}

</mosaic_0001>

<llo_original>
// kernel: mlp_forward.1
$region0: #{mlp_forward.1}
  #allocation0 [shape = 'u32[]', space=smem, size = 0x4, offset = 0x4, fixed_abs, tag = 'smem constant byte address 0x4 - core index']
  #allocation1 [shape = 'u32[144,128]{1,0:T(1,128)}', space=vmem, size = 0x12000, scoped, tag = 'internal scratch']
  %s0 = inlined_call_operand.vmem [shape: bf16[128,896], index: 0, kind: input, shape index: {}]
  %s1 = inlined_call_operand.vmem [shape: bf16[896,128], index: 1, kind: input, shape index: {}]
  %s2 = inlined_call_operand.vmem [shape: f32[1,128], index: 2, kind: input, shape index: {}]
  %s3 = inlined_call_operand.vmem [shape: bf16[128,128], index: 3, kind: input, shape index: {}]
  %s4 = inlined_call_operand.vmem [shape: f32[1,128], index: 4, kind: input, shape index: {}]
  %s5 = inlined_call_operand.vmem [shape: bf16[128,128], index: 5, kind: input, shape index: {}]
  %s6 = inlined_call_operand.vmem [shape: f32[1,128], index: 6, kind: input, shape index: {}]
  %s7 = inlined_call_operand.vmem [shape: f32[128,128], index: 7, kind: output, shape index: {}]
  %s8 = sld [smem:[#allocation0]]
  $region38: #{mlp_forward.1} parent=0
    _
  %s10 = ssub.s32 1, %s8
  %s11 = scalar_select 0, %s10, %s8
  // Predicated region
  $region2: #{mlp_forward.1} parent=0 // pred_check
    _
  $region3: #{mlp_forward.1} parent=0 // pred_check_branch
    %13 = sbr.rel (0) target = $region5
  $region4: #{mlp_forward.1} parent=0 // pred_region
    _
  $region5: #{mlp_forward.1} parent=0 // pred_fallthru
    _
  // Predicated region
  $region6: #{mlp_forward.1} parent=0 // pred_check
    _
  $region7: #{mlp_forward.1} parent=0 // pred_check_branch
    %15 = sbr.rel (0) target = $region9
  $region8: #{mlp_forward.1} parent=0 // pred_region
    _
  $region9: #{mlp_forward.1} parent=0 // pred_fallthru
    _
  // Predicated region
  $region10: #{mlp_forward.1} parent=0 // pred_check
    _
  $region11: #{mlp_forward.1} parent=0 // pred_check_branch
    %17 = sbr.rel (0) target = $region13
  $region12: #{mlp_forward.1} parent=0 // pred_region
    _
  $region13: #{mlp_forward.1} parent=0 // pred_fallthru
    _
  // Predicated region
  $region14: #{mlp_forward.1} parent=0 // pred_check
    _
  $region15: #{mlp_forward.1} parent=0 // pred_check_branch
    %19 = sbr.rel (0) target = $region17
  $region16: #{mlp_forward.1} parent=0 // pred_region
    _
  $region17: #{mlp_forward.1} parent=0 // pred_fallthru
    _
  // Predicated region
  $region18: #{mlp_forward.1} parent=0 // pred_check
    _
  $region19: #{mlp_forward.1} parent=0 // pred_check_branch
    %21 = sbr.rel (0) target = $region21
  $region20: #{mlp_forward.1} parent=0 // pred_region
    _
  $region21: #{mlp_forward.1} parent=0 // pred_fallthru
    _
  // Predicated region
  $region22: #{mlp_forward.1} parent=0 // pred_check
    _
  $region23: #{mlp_forward.1} parent=0 // pred_check_branch
    %23 = sbr.rel (0) target = $region25
  $region24: #{mlp_forward.1} parent=0 // pred_region
    _
  $region25: #{mlp_forward.1} parent=0 // pred_fallthru
    _
  // Predicated region
  $region26: #{mlp_forward.1} parent=0 // pred_check
    _
  $region27: #{mlp_forward.1} parent=0 // pred_check_branch
    %25 = sbr.rel (0) target = $region29
  $region28: #{mlp_forward.1} parent=0 // pred_region
    _
  $region29: #{mlp_forward.1} parent=0 // pred_fallthru
    _
  %v27 = vld [vmem:[%s0] sm:$0xff]
  %v28 = vld [vmem:[%s0 + $0x8] sm:$0xff]
  %v29 = vld [vmem:[%s0 + $0x10] sm:$0xff]
  %v30 = vld [vmem:[%s0 + $0x18] sm:$0xf]
  %v31 = vld [vmem:[%s0 + $0x1c] sm:$0xff]
  %v32 = vld [vmem:[%s0 + $0x24] sm:$0xff]
  %v33 = vld [vmem:[%s0 + $0x2c] sm:$0xff]
  %v34 = vld [vmem:[%s0 + $0x34] sm:$0xf]
  %v35 = vld [vmem:[%s0 + $0x38] sm:$0xff]
  %v36 = vld [vmem:[%s0 + $0x40] sm:$0xff]
  %v37 = vld [vmem:[%s0 + $0x48] sm:$0xff]
  %v38 = vld [vmem:[%s0 + $0x50] sm:$0xf]
  %v39 = vld [vmem:[%s0 + $0x54] sm:$0xff]
  %v40 = vld [vmem:[%s0 + $0x5c] sm:$0xff]
  %v41 = vld [vmem:[%s0 + $0x64] sm:$0xff]
  %v42 = vld [vmem:[%s0 + $0x6c] sm:$0xf]
  %v43 = vld [vmem:[%s0 + $0x70] sm:$0xff]
  %v44 = vld [vmem:[%s0 + $0x78] sm:$0xff]
  %v45 = vld [vmem:[%s0 + $0x80] sm:$0xff]
  %v46 = vld [vmem:[%s0 + $0x88] sm:$0xf]
  %v47 = vld [vmem:[%s0 + $0x8c] sm:$0xff]
  %v48 = vld [vmem:[%s0 + $0x94] sm:$0xff]
  %v49 = vld [vmem:[%s0 + $0x9c] sm:$0xff]
  %v50 = vld [vmem:[%s0 + $0xa4] sm:$0xf]
  %v51 = vld [vmem:[%s0 + $0xa8] sm:$0xff]
  %v52 = vld [vmem:[%s0 + $0xb0] sm:$0xff]
  %v53 = vld [vmem:[%s0 + $0xb8] sm:$0xff]
  %v54 = vld [vmem:[%s0 + $0xc0] sm:$0xf]
  %v55 = vld [vmem:[%s0 + $0xc4] sm:$0xff]
  %v56 = vld [vmem:[%s0 + $0xcc] sm:$0xff]
  %v57 = vld [vmem:[%s0 + $0xd4] sm:$0xff]
  %v58 = vld [vmem:[%s0 + $0xdc] sm:$0xf]
  %v59 = vld [vmem:[%s0 + $0xe0] sm:$0xff]
  %v60 = vld [vmem:[%s0 + $0xe8] sm:$0xff]
  %v61 = vld [vmem:[%s0 + $0xf0] sm:$0xff]
  %v62 = vld [vmem:[%s0 + $0xf8] sm:$0xf]
  %v63 = vld [vmem:[%s0 + $0xfc] sm:$0xff]
  %v64 = vld [vmem:[%s0 + $0x104] sm:$0xff]
  %v65 = vld [vmem:[%s0 + $0x10c] sm:$0xff]
  %v66 = vld [vmem:[%s0 + $0x114] sm:$0xf]
  %v67 = vld [vmem:[%s0 + $0x118] sm:$0xff]
  %v68 = vld [vmem:[%s0 + $0x120] sm:$0xff]
  %v69 = vld [vmem:[%s0 + $0x128] sm:$0xff]
  %v70 = vld [vmem:[%s0 + $0x130] sm:$0xf]
  %v71 = vld [vmem:[%s0 + $0x134] sm:$0xff]
  %v72 = vld [vmem:[%s0 + $0x13c] sm:$0xff]
  %v73 = vld [vmem:[%s0 + $0x144] sm:$0xff]
  %v74 = vld [vmem:[%s0 + $0x14c] sm:$0xf]
  %v75 = vld [vmem:[%s0 + $0x150] sm:$0xff]
  %v76 = vld [vmem:[%s0 + $0x158] sm:$0xff]
  %v77 = vld [vmem:[%s0 + $0x160] sm:$0xff]
  %v78 = vld [vmem:[%s0 + $0x168] sm:$0xf]
  %v79 = vld [vmem:[%s0 + $0x16c] sm:$0xff]
  %v80 = vld [vmem:[%s0 + $0x174] sm:$0xff]
  %v81 = vld [vmem:[%s0 + $0x17c] sm:$0xff]
  %v82 = vld [vmem:[%s0 + $0x184] sm:$0xf]
  %v83 = vld [vmem:[%s0 + $0x188] sm:$0xff]
  %v84 = vld [vmem:[%s0 + $0x190] sm:$0xff]
  %v85 = vld [vmem:[%s0 + $0x198] sm:$0xff]
  %v86 = vld [vmem:[%s0 + $0x1a0] sm:$0xf]
  %v87 = vld [vmem:[%s0 + $0x1a4] sm:$0xff]
  %v88 = vld [vmem:[%s0 + $0x1ac] sm:$0xff]
  %v89 = vld [vmem:[%s0 + $0x1b4] sm:$0xff]
  %v90 = vld [vmem:[%s0 + $0x1bc] sm:$0xf]
  %v91 = vld [vmem:[%s1] sm:$0xf]
  %v92 = vld [vmem:[%s1 + $0x4] sm:$0xf]
  %v93 = vld [vmem:[%s1 + $0x8] sm:$0xf]
  %v94 = vld [vmem:[%s1 + $0xc] sm:$0xf]
  %v95 = vld [vmem:[%s1 + $0x10] sm:$0xf]
  %v96 = vld [vmem:[%s1 + $0x14] sm:$0xf]
  %v97 = vld [vmem:[%s1 + $0x18] sm:$0xf]
  %v98 = vld [vmem:[%s1 + $0x1c] sm:$0xf]
  %v99 = vld [vmem:[%s1 + $0x20] sm:$0xf]
  %v100 = vld [vmem:[%s1 + $0x24] sm:$0xf]
  %v101 = vld [vmem:[%s1 + $0x28] sm:$0xf]
  %v102 = vld [vmem:[%s1 + $0x2c] sm:$0xf]
  %v103 = vld [vmem:[%s1 + $0x30] sm:$0xf]
  %v104 = vld [vmem:[%s1 + $0x34] sm:$0xf]
  %v105 = vld [vmem:[%s1 + $0x38] sm:$0xf]
  %v106 = vld [vmem:[%s1 + $0x3c] sm:$0xf]
  %v107 = vld [vmem:[%s1 + $0x40] sm:$0xf]
  %v108 = vld [vmem:[%s1 + $0x44] sm:$0xf]
  %v109 = vld [vmem:[%s1 + $0x48] sm:$0xf]
  %v110 = vld [vmem:[%s1 + $0x4c] sm:$0xf]
  %v111 = vld [vmem:[%s1 + $0x50] sm:$0xf]
  %v112 = vld [vmem:[%s1 + $0x54] sm:$0xf]
  %v113 = vld [vmem:[%s1 + $0x58] sm:$0xf]
  %v114 = vld [vmem:[%s1 + $0x5c] sm:$0xf]
  %v115 = vld [vmem:[%s1 + $0x60] sm:$0xf]
  %v116 = vld [vmem:[%s1 + $0x64] sm:$0xf]
  %v117 = vld [vmem:[%s1 + $0x68] sm:$0xf]
  %v118 = vld [vmem:[%s1 + $0x6c] sm:$0xf]
  %v119 = vld [vmem:[%s1 + $0x70] sm:$0xf]
  %v120 = vld [vmem:[%s1 + $0x74] sm:$0xf]
  %v121 = vld [vmem:[%s1 + $0x78] sm:$0xf]
  %v122 = vld [vmem:[%s1 + $0x7c] sm:$0xf]
  %v123 = vld [vmem:[%s1 + $0x80] sm:$0xf]
  %v124 = vld [vmem:[%s1 + $0x84] sm:$0xf]
  %v125 = vld [vmem:[%s1 + $0x88] sm:$0xf]
  %v126 = vld [vmem:[%s1 + $0x8c] sm:$0xf]
  %v127 = vld [vmem:[%s1 + $0x90] sm:$0xf]
  %v128 = vld [vmem:[%s1 + $0x94] sm:$0xf]
  %v129 = vld [vmem:[%s1 + $0x98] sm:$0xf]
  %v130 = vld [vmem:[%s1 + $0x9c] sm:$0xf]
  %v131 = vld [vmem:[%s1 + $0xa0] sm:$0xf]
  %v132 = vld [vmem:[%s1 + $0xa4] sm:$0xf]
  %v133 = vld [vmem:[%s1 + $0xa8] sm:$0xf]
  %v134 = vld [vmem:[%s1 + $0xac] sm:$0xf]
  %v135 = vld [vmem:[%s1 + $0xb0] sm:$0xf]
  %v136 = vld [vmem:[%s1 + $0xb4] sm:$0xf]
  %v137 = vld [vmem:[%s1 + $0xb8] sm:$0xf]
  %v138 = vld [vmem:[%s1 + $0xbc] sm:$0xf]
  %v139 = vld [vmem:[%s1 + $0xc0] sm:$0xf]
  %v140 = vld [vmem:[%s1 + $0xc4] sm:$0xf]
  %v141 = vld [vmem:[%s1 + $0xc8] sm:$0xf]
  %v142 = vld [vmem:[%s1 + $0xcc] sm:$0xf]
  %v143 = vld [vmem:[%s1 + $0xd0] sm:$0xf]
  %v144 = vld [vmem:[%s1 + $0xd4] sm:$0xf]
  %v145 = vld [vmem:[%s1 + $0xd8] sm:$0xf]
  %v146 = vld [vmem:[%s1 + $0xdc] sm:$0xf]
  %v147 = vld [vmem:[%s1 + $0xe0] sm:$0xf]
  %v148 = vld [vmem:[%s1 + $0xe4] sm:$0xf]
  %v149 = vld [vmem:[%s1 + $0xe8] sm:$0xf]
  %v150 = vld [vmem:[%s1 + $0xec] sm:$0xf]
  %v151 = vld [vmem:[%s1 + $0xf0] sm:$0xf]
  %v152 = vld [vmem:[%s1 + $0xf4] sm:$0xf]
  %v153 = vld [vmem:[%s1 + $0xf8] sm:$0xf]
  %v154 = vld [vmem:[%s1 + $0xfc] sm:$0xf]
  %v155 = vld [vmem:[%s1 + $0x100] sm:$0xf]
  %v156 = vld [vmem:[%s1 + $0x104] sm:$0xf]
  %v157 = vld [vmem:[%s1 + $0x108] sm:$0xf]
  %v158 = vld [vmem:[%s1 + $0x10c] sm:$0xf]
  %v159 = vld [vmem:[%s1 + $0x110] sm:$0xf]
  %v160 = vld [vmem:[%s1 + $0x114] sm:$0xf]
  %v161 = vld [vmem:[%s1 + $0x118] sm:$0xf]
  %v162 = vld [vmem:[%s1 + $0x11c] sm:$0xf]
  %v163 = vld [vmem:[%s1 + $0x120] sm:$0xf]
  %v164 = vld [vmem:[%s1 + $0x124] sm:$0xf]
  %v165 = vld [vmem:[%s1 + $0x128] sm:$0xf]
  %v166 = vld [vmem:[%s1 + $0x12c] sm:$0xf]
  %v167 = vld [vmem:[%s1 + $0x130] sm:$0xf]
  %v168 = vld [vmem:[%s1 + $0x134] sm:$0xf]
  %v169 = vld [vmem:[%s1 + $0x138] sm:$0xf]
  %v170 = vld [vmem:[%s1 + $0x13c] sm:$0xf]
  %v171 = vld [vmem:[%s1 + $0x140] sm:$0xf]
  %v172 = vld [vmem:[%s1 + $0x144] sm:$0xf]
  %v173 = vld [vmem:[%s1 + $0x148] sm:$0xf]
  %v174 = vld [vmem:[%s1 + $0x14c] sm:$0xf]
  %v175 = vld [vmem:[%s1 + $0x150] sm:$0xf]
  %v176 = vld [vmem:[%s1 + $0x154] sm:$0xf]
  %v177 = vld [vmem:[%s1 + $0x158] sm:$0xf]
  %v178 = vld [vmem:[%s1 + $0x15c] sm:$0xf]
  %v179 = vld [vmem:[%s1 + $0x160] sm:$0xf]
  %v180 = vld [vmem:[%s1 + $0x164] sm:$0xf]
  %v181 = vld [vmem:[%s1 + $0x168] sm:$0xf]
  %v182 = vld [vmem:[%s1 + $0x16c] sm:$0xf]
  %v183 = vld [vmem:[%s1 + $0x170] sm:$0xf]
  %v184 = vld [vmem:[%s1 + $0x174] sm:$0xf]
  %v185 = vld [vmem:[%s1 + $0x178] sm:$0xf]
  %v186 = vld [vmem:[%s1 + $0x17c] sm:$0xf]
  %v187 = vld [vmem:[%s1 + $0x180] sm:$0xf]
  %v188 = vld [vmem:[%s1 + $0x184] sm:$0xf]
  %v189 = vld [vmem:[%s1 + $0x188] sm:$0xf]
  %v190 = vld [vmem:[%s1 + $0x18c] sm:$0xf]
  %v191 = vld [vmem:[%s1 + $0x190] sm:$0xf]
  %v192 = vld [vmem:[%s1 + $0x194] sm:$0xf]
  %v193 = vld [vmem:[%s1 + $0x198] sm:$0xf]
  %v194 = vld [vmem:[%s1 + $0x19c] sm:$0xf]
  %v195 = vld [vmem:[%s1 + $0x1a0] sm:$0xf]
  %v196 = vld [vmem:[%s1 + $0x1a4] sm:$0xf]
  %v197 = vld [vmem:[%s1 + $0x1a8] sm:$0xf]
  %v198 = vld [vmem:[%s1 + $0x1ac] sm:$0xf]
  %v199 = vld [vmem:[%s1 + $0x1b0] sm:$0xf]
  %v200 = vld [vmem:[%s1 + $0x1b4] sm:$0xf]
  %v201 = vld [vmem:[%s1 + $0x1b8] sm:$0xf]
  %v202 = vld [vmem:[%s1 + $0x1bc] sm:$0xf]
  %v203 = vld [vmem:[%s2] sm:$0x1]
  %v205 = vlaneseq
  %v206 = vshrl.u32 %v205, 7
  %v207 = vsub.s32 0, %v206
  %v208 = vrot.slane %v203, %v207
  %v274 = vunpack.c.l.b16 %v27
  %v275 = vunpack.c.h.b16 %v27
  %v276 = vunpack.c.l.b16 %v28
  %v277 = vunpack.c.h.b16 %v28
  %v278 = vunpack.c.l.b16 %v29
  %v279 = vunpack.c.h.b16 %v29
  %v280 = vunpack.c.l.b16 %v30
  %v281 = vunpack.c.l.b16 %v31
  %v282 = vunpack.c.h.b16 %v31
  %v283 = vunpack.c.l.b16 %v32
  %v284 = vunpack.c.h.b16 %v32
  %v285 = vunpack.c.l.b16 %v33
  %v286 = vunpack.c.h.b16 %v33
  %v287 = vunpack.c.l.b16 %v34
  %v288 = vunpack.c.l.b16 %v35
  %v289 = vunpack.c.h.b16 %v35
  %v290 = vunpack.c.l.b16 %v36
  %v291 = vunpack.c.h.b16 %v36
  %v292 = vunpack.c.l.b16 %v37
  %v293 = vunpack.c.h.b16 %v37
  %v294 = vunpack.c.l.b16 %v38
  %v295 = vunpack.c.l.b16 %v39
  %v296 = vunpack.c.h.b16 %v39
  %v297 = vunpack.c.l.b16 %v40
  %v298 = vunpack.c.h.b16 %v40
  %v299 = vunpack.c.l.b16 %v41
  %v300 = vunpack.c.h.b16 %v41
  %v301 = vunpack.c.l.b16 %v42
  %v302 = vunpack.c.l.b16 %v43
  %v303 = vunpack.c.h.b16 %v43
  %v304 = vunpack.c.l.b16 %v44
  %v305 = vunpack.c.h.b16 %v44
  %v306 = vunpack.c.l.b16 %v45
  %v307 = vunpack.c.h.b16 %v45
  %v308 = vunpack.c.l.b16 %v46
  %v309 = vunpack.c.l.b16 %v47
  %v310 = vunpack.c.h.b16 %v47
  %v311 = vunpack.c.l.b16 %v48
  %v312 = vunpack.c.h.b16 %v48
  %v313 = vunpack.c.l.b16 %v49
  %v314 = vunpack.c.h.b16 %v49
  %v315 = vunpack.c.l.b16 %v50
  %v316 = vunpack.c.l.b16 %v51
  %v317 = vunpack.c.h.b16 %v51
  %v318 = vunpack.c.l.b16 %v52
  %v319 = vunpack.c.h.b16 %v52
  %v320 = vunpack.c.l.b16 %v53
  %v321 = vunpack.c.h.b16 %v53
  %v322 = vunpack.c.l.b16 %v54
  %v323 = vunpack.c.l.b16 %v55
  %v324 = vunpack.c.h.b16 %v55
  %v325 = vunpack.c.l.b16 %v56
  %v326 = vunpack.c.h.b16 %v56
  %v327 = vunpack.c.l.b16 %v57
  %v328 = vunpack.c.h.b16 %v57
  %v329 = vunpack.c.l.b16 %v58
  %v330 = vunpack.c.l.b16 %v59
  %v331 = vunpack.c.h.b16 %v59
  %v332 = vunpack.c.l.b16 %v60
  %v333 = vunpack.c.h.b16 %v60
  %v334 = vunpack.c.l.b16 %v61
  %v335 = vunpack.c.h.b16 %v61
  %v336 = vunpack.c.l.b16 %v62
  %v337 = vunpack.c.l.b16 %v63
  %v338 = vunpack.c.h.b16 %v63
  %v339 = vunpack.c.l.b16 %v64
  %v340 = vunpack.c.h.b16 %v64
  %v341 = vunpack.c.l.b16 %v65
  %v342 = vunpack.c.h.b16 %v65
  %v343 = vunpack.c.l.b16 %v66
  %v344 = vunpack.c.l.b16 %v67
  %v345 = vunpack.c.h.b16 %v67
  %v346 = vunpack.c.l.b16 %v68
  %v347 = vunpack.c.h.b16 %v68
  %v348 = vunpack.c.l.b16 %v69
  %v349 = vunpack.c.h.b16 %v69
  %v350 = vunpack.c.l.b16 %v70
  %v351 = vunpack.c.l.b16 %v71
  %v352 = vunpack.c.h.b16 %v71
  %v353 = vunpack.c.l.b16 %v72
  %v354 = vunpack.c.h.b16 %v72
  %v355 = vunpack.c.l.b16 %v73
  %v356 = vunpack.c.h.b16 %v73
  %v357 = vunpack.c.l.b16 %v74
  %v358 = vunpack.c.l.b16 %v75
  %v359 = vunpack.c.h.b16 %v75
  %v360 = vunpack.c.l.b16 %v76
  %v361 = vunpack.c.h.b16 %v76
  %v362 = vunpack.c.l.b16 %v77
  %v363 = vunpack.c.h.b16 %v77
  %v364 = vunpack.c.l.b16 %v78
  %v365 = vunpack.c.l.b16 %v79
  %v366 = vunpack.c.h.b16 %v79
  %v367 = vunpack.c.l.b16 %v80
  %v368 = vunpack.c.h.b16 %v80
  %v369 = vunpack.c.l.b16 %v81
  %v370 = vunpack.c.h.b16 %v81
  %v371 = vunpack.c.l.b16 %v82
  %v372 = vunpack.c.l.b16 %v83
  %v373 = vunpack.c.h.b16 %v83
  %v374 = vunpack.c.l.b16 %v84
  %v375 = vunpack.c.h.b16 %v84
  %v376 = vunpack.c.l.b16 %v85
  %v377 = vunpack.c.h.b16 %v85
  %v378 = vunpack.c.l.b16 %v86
  %v379 = vunpack.c.l.b16 %v87
  %v380 = vunpack.c.h.b16 %v87
  %v381 = vunpack.c.l.b16 %v88
  %v382 = vunpack.c.h.b16 %v88
  %v383 = vunpack.c.l.b16 %v89
  %v384 = vunpack.c.h.b16 %v89
  %v385 = vunpack.c.l.b16 %v90
  %v386 = vpack.c.b16 %v281, %v274
  %v387 = vpack.c.b16 %v282, %v275
  %v388 = vpack.c.b16 %v283, %v276
  %v389 = vpack.c.b16 %v284, %v277
  %v390 = vpack.c.b16 %v285, %v278
  %v391 = vpack.c.b16 %v286, %v279
  %v392 = vpack.c.b16 %v287, %v280
  %v393 = vpack.c.b16 %v295, %v288
  %v394 = vpack.c.b16 %v296, %v289
  %v395 = vpack.c.b16 %v297, %v290
  %v396 = vpack.c.b16 %v298, %v291
  %v397 = vpack.c.b16 %v299, %v292
  %v398 = vpack.c.b16 %v300, %v293
  %v399 = vpack.c.b16 %v301, %v294
  %v400 = vpack.c.b16 %v309, %v302
  %v401 = vpack.c.b16 %v310, %v303
  %v402 = vpack.c.b16 %v311, %v304
  %v403 = vpack.c.b16 %v312, %v305
  %v404 = vpack.c.b16 %v313, %v306
  %v405 = vpack.c.b16 %v314, %v307
  %v406 = vpack.c.b16 %v315, %v308
  %v407 = vpack.c.b16 %v323, %v316
  %v408 = vpack.c.b16 %v324, %v317
  %v409 = vpack.c.b16 %v325, %v318
  %v410 = vpack.c.b16 %v326, %v319
  %v411 = vpack.c.b16 %v327, %v320
  %v412 = vpack.c.b16 %v328, %v321
  %v413 = vpack.c.b16 %v329, %v322
  %v414 = vpack.c.b16 %v337, %v330
  %v415 = vpack.c.b16 %v338, %v331
  %v416 = vpack.c.b16 %v339, %v332
  %v417 = vpack.c.b16 %v340, %v333
  %v418 = vpack.c.b16 %v341, %v334
  %v419 = vpack.c.b16 %v342, %v335
  %v420 = vpack.c.b16 %v343, %v336
  %v421 = vpack.c.b16 %v351, %v344
  %v422 = vpack.c.b16 %v352, %v345
  %v423 = vpack.c.b16 %v353, %v346
  %v424 = vpack.c.b16 %v354, %v347
  %v425 = vpack.c.b16 %v355, %v348
  %v426 = vpack.c.b16 %v356, %v349
  %v427 = vpack.c.b16 %v357, %v350
  %v428 = vpack.c.b16 %v365, %v358
  %v429 = vpack.c.b16 %v366, %v359
  %v430 = vpack.c.b16 %v367, %v360
  %v431 = vpack.c.b16 %v368, %v361
  %v432 = vpack.c.b16 %v369, %v362
  %v433 = vpack.c.b16 %v370, %v363
  %v434 = vpack.c.b16 %v371, %v364
  %v435 = vpack.c.b16 %v379, %v372
  %v436 = vpack.c.b16 %v380, %v373
  %v437 = vpack.c.b16 %v381, %v374
  %v438 = vpack.c.b16 %v382, %v375
  %v439 = vpack.c.b16 %v383, %v376
  %v440 = vpack.c.b16 %v384, %v377
  %v441 = vpack.c.b16 %v385, %v378
  %v610 = vunpack.c.l.b16 %v91
  %v611 = vunpack.c.l.b16 %v92
  %v612 = vunpack.c.l.b16 %v93
  %v613 = vunpack.c.l.b16 %v94
  %v614 = vunpack.c.l.b16 %v95
  %v615 = vunpack.c.l.b16 %v96
  %v616 = vunpack.c.l.b16 %v97
  %v617 = vunpack.c.l.b16 %v98
  %v618 = vunpack.c.l.b16 %v99
  %v619 = vunpack.c.l.b16 %v100
  %v620 = vunpack.c.l.b16 %v101
  %v621 = vunpack.c.l.b16 %v102
  %v622 = vunpack.c.l.b16 %v103
  %v623 = vunpack.c.l.b16 %v104
  %v624 = vunpack.c.l.b16 %v105
  %v625 = vunpack.c.l.b16 %v106
  %v626 = vunpack.c.l.b16 %v107
  %v627 = vunpack.c.l.b16 %v108
  %v628 = vunpack.c.l.b16 %v109
  %v629 = vunpack.c.l.b16 %v110
  %v630 = vunpack.c.l.b16 %v111
  %v631 = vunpack.c.l.b16 %v112
  %v632 = vunpack.c.l.b16 %v113
  %v633 = vunpack.c.l.b16 %v114
  %v634 = vunpack.c.l.b16 %v115
  %v635 = vunpack.c.l.b16 %v116
  %v636 = vunpack.c.l.b16 %v117
  %v637 = vunpack.c.l.b16 %v118
  %v638 = vunpack.c.l.b16 %v119
  %v639 = vunpack.c.l.b16 %v120
  %v640 = vunpack.c.l.b16 %v121
  %v641 = vunpack.c.l.b16 %v122
  %v642 = vunpack.c.l.b16 %v123
  %v643 = vunpack.c.l.b16 %v124
  %v644 = vunpack.c.l.b16 %v125
  %v645 = vunpack.c.l.b16 %v126
  %v646 = vunpack.c.l.b16 %v127
  %v647 = vunpack.c.l.b16 %v128
  %v648 = vunpack.c.l.b16 %v129
  %v649 = vunpack.c.l.b16 %v130
  %v650 = vunpack.c.l.b16 %v131
  %v651 = vunpack.c.l.b16 %v132
  %v652 = vunpack.c.l.b16 %v133
  %v653 = vunpack.c.l.b16 %v134
  %v654 = vunpack.c.l.b16 %v135
  %v655 = vunpack.c.l.b16 %v136
  %v656 = vunpack.c.l.b16 %v137
  %v657 = vunpack.c.l.b16 %v138
  %v658 = vunpack.c.l.b16 %v139
  %v659 = vunpack.c.l.b16 %v140
  %v660 = vunpack.c.l.b16 %v141
  %v661 = vunpack.c.l.b16 %v142
  %v662 = vunpack.c.l.b16 %v143
  %v663 = vunpack.c.l.b16 %v144
  %v664 = vunpack.c.l.b16 %v145
  %v665 = vunpack.c.l.b16 %v146
  %v666 = vunpack.c.l.b16 %v147
  %v667 = vunpack.c.l.b16 %v148
  %v668 = vunpack.c.l.b16 %v149
  %v669 = vunpack.c.l.b16 %v150
  %v670 = vunpack.c.l.b16 %v151
  %v671 = vunpack.c.l.b16 %v152
  %v672 = vunpack.c.l.b16 %v153
  %v673 = vunpack.c.l.b16 %v154
  %v674 = vunpack.c.l.b16 %v155
  %v675 = vunpack.c.l.b16 %v156
  %v676 = vunpack.c.l.b16 %v157
  %v677 = vunpack.c.l.b16 %v158
  %v678 = vunpack.c.l.b16 %v159
  %v679 = vunpack.c.l.b16 %v160
  %v680 = vunpack.c.l.b16 %v161
  %v681 = vunpack.c.l.b16 %v162
  %v682 = vunpack.c.l.b16 %v163
  %v683 = vunpack.c.l.b16 %v164
  %v684 = vunpack.c.l.b16 %v165
  %v685 = vunpack.c.l.b16 %v166
  %v686 = vunpack.c.l.b16 %v167
  %v687 = vunpack.c.l.b16 %v168
  %v688 = vunpack.c.l.b16 %v169
  %v689 = vunpack.c.l.b16 %v170
  %v690 = vunpack.c.l.b16 %v171
  %v691 = vunpack.c.l.b16 %v172
  %v692 = vunpack.c.l.b16 %v173
  %v693 = vunpack.c.l.b16 %v174
  %v694 = vunpack.c.l.b16 %v175
  %v695 = vunpack.c.l.b16 %v176
  %v696 = vunpack.c.l.b16 %v177
  %v697 = vunpack.c.l.b16 %v178
  %v698 = vunpack.c.l.b16 %v179
  %v699 = vunpack.c.l.b16 %v180
  %v700 = vunpack.c.l.b16 %v181
  %v701 = vunpack.c.l.b16 %v182
  %v702 = vunpack.c.l.b16 %v183
  %v703 = vunpack.c.l.b16 %v184
  %v704 = vunpack.c.l.b16 %v185
  %v705 = vunpack.c.l.b16 %v186
  %v706 = vunpack.c.l.b16 %v187
  %v707 = vunpack.c.l.b16 %v188
  %v708 = vunpack.c.l.b16 %v189
  %v709 = vunpack.c.l.b16 %v190
  %v710 = vunpack.c.l.b16 %v191
  %v711 = vunpack.c.l.b16 %v192
  %v712 = vunpack.c.l.b16 %v193
  %v713 = vunpack.c.l.b16 %v194
  %v714 = vunpack.c.l.b16 %v195
  %v715 = vunpack.c.l.b16 %v196
  %v716 = vunpack.c.l.b16 %v197
  %v717 = vunpack.c.l.b16 %v198
  %v718 = vunpack.c.l.b16 %v199
  %v719 = vunpack.c.l.b16 %v200
  %v720 = vunpack.c.l.b16 %v201
  %v721 = vunpack.c.l.b16 %v202
  %v722 = vpack.c.b16 %v611, %v610
  %v723 = vpack.c.b16 %v613, %v612
  %v724 = vpack.c.b16 %v615, %v614
  %v725 = vpack.c.b16 %v617, %v616
  %v726 = vpack.c.b16 %v619, %v618
  %v727 = vpack.c.b16 %v621, %v620
  %v728 = vpack.c.b16 %v623, %v622
  %v729 = vpack.c.b16 %v625, %v624
  %v730 = vpack.c.b16 %v627, %v626
  %v731 = vpack.c.b16 %v629, %v628
  %v732 = vpack.c.b16 %v631, %v630
  %v733 = vpack.c.b16 %v633, %v632
  %v734 = vpack.c.b16 %v635, %v634
  %v735 = vpack.c.b16 %v637, %v636
  %v736 = vpack.c.b16 %v639, %v638
  %v737 = vpack.c.b16 %v641, %v640
  %v738 = vpack.c.b16 %v643, %v642
  %v739 = vpack.c.b16 %v645, %v644
  %v740 = vpack.c.b16 %v647, %v646
  %v741 = vpack.c.b16 %v649, %v648
  %v742 = vpack.c.b16 %v651, %v650
  %v743 = vpack.c.b16 %v653, %v652
  %v744 = vpack.c.b16 %v655, %v654
  %v745 = vpack.c.b16 %v657, %v656
  %v746 = vpack.c.b16 %v659, %v658
  %v747 = vpack.c.b16 %v661, %v660
  %v748 = vpack.c.b16 %v663, %v662
  %v749 = vpack.c.b16 %v665, %v664
  %v750 = vpack.c.b16 %v667, %v666
  %v751 = vpack.c.b16 %v669, %v668
  %v752 = vpack.c.b16 %v671, %v670
  %v753 = vpack.c.b16 %v673, %v672
  %v754 = vpack.c.b16 %v675, %v674
  %v755 = vpack.c.b16 %v677, %v676
  %v756 = vpack.c.b16 %v679, %v678
  %v757 = vpack.c.b16 %v681, %v680
  %v758 = vpack.c.b16 %v683, %v682
  %v759 = vpack.c.b16 %v685, %v684
  %v760 = vpack.c.b16 %v687, %v686
  %v761 = vpack.c.b16 %v689, %v688
  %v762 = vpack.c.b16 %v691, %v690
  %v763 = vpack.c.b16 %v693, %v692
  %v764 = vpack.c.b16 %v695, %v694
  %v765 = vpack.c.b16 %v697, %v696
  %v766 = vpack.c.b16 %v699, %v698
  %v767 = vpack.c.b16 %v701, %v700
  %v768 = vpack.c.b16 %v703, %v702
  %v769 = vpack.c.b16 %v705, %v704
  %v770 = vpack.c.b16 %v707, %v706
  %v771 = vpack.c.b16 %v709, %v708
  %v772 = vpack.c.b16 %v711, %v710
  %v773 = vpack.c.b16 %v713, %v712
  %v774 = vpack.c.b16 %v715, %v714
  %v775 = vpack.c.b16 %v717, %v716
  %v776 = vpack.c.b16 %v719, %v718
  %v777 = vpack.c.b16 %v721, %v720
  %834 = vmatprep.subr.bf16.mxu0 0
  %835 = vmatpush1.bf16.msra.mxu0 %v729
  %836 = vmatprep.subr.bf16.mxu0 0
  %837 = vmatpush1.bf16.msra.mxu0 %v728
  %838 = vmatprep.subr.bf16.mxu0 0
  %839 = vmatpush1.bf16.msra.mxu0 %v727
  %840 = vmatprep.subr.bf16.mxu0 0
  %841 = vmatpush1.bf16.msra.mxu0 %v726
  %842 = vmatprep.subr.bf16.mxu0 0
  %843 = vmatpush1.bf16.msra.mxu0 %v725
  %844 = vmatprep.subr.bf16.mxu0 0
  %845 = vmatpush1.bf16.msra.mxu0 %v724
  %846 = vmatprep.subr.bf16.mxu0 0
  %847 = vmatpush1.bf16.msra.mxu0 %v723
  %848 = vmatprep.subr.bf16.mxu0 0
  %849 = vmatpush1.bf16.msra.mxu0 %v722
  %850 = vmatprep.subr.bf16.mxu0 0
  %851 = vmatpush2.bf16.msra.mxu0 %v737
  %852 = vmatprep.subr.bf16.mxu0 0
  %853 = vmatpush2.bf16.msra.mxu0 %v736
  %854 = vmatprep.subr.bf16.mxu0 0
  %855 = vmatpush2.bf16.msra.mxu0 %v735
  %856 = vmatprep.subr.bf16.mxu0 0
  %857 = vmatpush2.bf16.msra.mxu0 %v734
  %858 = vmatprep.subr.bf16.mxu0 0
  %859 = vmatpush2.bf16.msra.mxu0 %v733
  %860 = vmatprep.subr.bf16.mxu0 0
  %861 = vmatpush2.bf16.msra.mxu0 %v732
  %862 = vmatprep.subr.bf16.mxu0 0
  %863 = vmatpush2.bf16.msra.mxu0 %v731
  %864 = vmatprep.subr.bf16.mxu0 0
  %865 = vmatpush2.bf16.msra.mxu0 %v730
  %866 = vmatprep.mubr.bf16.mxu0 %v387
  %867 = vmatmul.mubr.bf16.gmra.mxu0 %v386
  %v868 = vpop.f32.mrf.mxu0
  %v869 = vadd.f32 %v208, %v868
  %v870 = vpop.f32.mrf.mxu0
  %v871 = vpop.f32.mrf.mxu0
  %v872 = vadd.f32 %v208, %v871
  %v873 = vpop.f32.mrf.mxu0
  %874 = vmatprep.mubr.bf16.mxu0 %v394
  %875 = vmatmul.mubr.bf16.gmra.mxu0 %v393
  %v876 = vpop.f32.mrf.mxu0
  %v877 = vadd.f32 %v208, %v876
  %v878 = vpop.f32.mrf.mxu0
  %v879 = vpop.f32.mrf.mxu0
  %v880 = vadd.f32 %v208, %v879
  %v881 = vpop.f32.mrf.mxu0
  %882 = vmatprep.mubr.bf16.mxu0 %v401
  %883 = vmatmul.mubr.bf16.gmra.mxu0 %v400
  %v884 = vpop.f32.mrf.mxu0
  %v885 = vadd.f32 %v208, %v884
  %v886 = vpop.f32.mrf.mxu0
  %v887 = vpop.f32.mrf.mxu0
  %v888 = vadd.f32 %v208, %v887
  %v889 = vpop.f32.mrf.mxu0
  %890 = vmatprep.mubr.bf16.mxu0 %v408
  %891 = vmatmul.mubr.bf16.gmra.mxu0 %v407
  %v892 = vpop.f32.mrf.mxu0
  %v893 = vadd.f32 %v208, %v892
  %v894 = vpop.f32.mrf.mxu0
  %v895 = vpop.f32.mrf.mxu0
  %v896 = vadd.f32 %v208, %v895
  %v897 = vpop.f32.mrf.mxu0
  %898 = vmatprep.mubr.bf16.mxu0 %v415
  %899 = vmatmul.mubr.bf16.gmra.mxu0 %v414
  %v900 = vpop.f32.mrf.mxu0
  %v901 = vadd.f32 %v208, %v900
  %v902 = vpop.f32.mrf.mxu0
  %v903 = vpop.f32.mrf.mxu0
  %v904 = vadd.f32 %v208, %v903
  %v905 = vpop.f32.mrf.mxu0
  %906 = vmatprep.mubr.bf16.mxu0 %v422
  %907 = vmatmul.mubr.bf16.gmra.mxu0 %v421
  %v908 = vpop.f32.mrf.mxu0
  %v909 = vadd.f32 %v208, %v908
  %v910 = vpop.f32.mrf.mxu0
  %v911 = vpop.f32.mrf.mxu0
  %v912 = vadd.f32 %v208, %v911
  %v913 = vpop.f32.mrf.mxu0
  %914 = vmatprep.mubr.bf16.mxu0 %v429
  %915 = vmatmul.mubr.bf16.gmra.mxu0 %v428
  %v916 = vpop.f32.mrf.mxu0
  %v917 = vadd.f32 %v208, %v916
  %v918 = vpop.f32.mrf.mxu0
  %v919 = vpop.f32.mrf.mxu0
  %v920 = vadd.f32 %v208, %v919
  %v921 = vpop.f32.mrf.mxu0
  %922 = vmatprep.mubr.bf16.mxu0 %v436
  %923 = vmatmul.mubr.bf16.gmra.mxu0 %v435
  %v924 = vpop.f32.mrf.mxu0
  %v925 = vadd.f32 %v208, %v924
  %v926 = vpop.f32.mrf.mxu0
  %v927 = vpop.f32.mrf.mxu0
  %v928 = vadd.f32 %v208, %v927
  %v929 = vpop.f32.mrf.mxu0
  %930 = vdwg.mxu0
  %931 = vmatprep.subr.bf16.mxu0 0
  %932 = vmatpush1.bf16.msra.mxu0 %v745
  %933 = vmatprep.subr.bf16.mxu0 0
  %934 = vmatpush1.bf16.msra.mxu0 %v744
  %935 = vmatprep.subr.bf16.mxu0 0
  %936 = vmatpush1.bf16.msra.mxu0 %v743
  %937 = vmatprep.subr.bf16.mxu0 0
  %938 = vmatpush1.bf16.msra.mxu0 %v742
  %939 = vmatprep.subr.bf16.mxu0 0
  %940 = vmatpush1.bf16.msra.mxu0 %v741
  %941 = vmatprep.subr.bf16.mxu0 0
  %942 = vmatpush1.bf16.msra.mxu0 %v740
  %943 = vmatprep.subr.bf16.mxu0 0
  %944 = vmatpush1.bf16.msra.mxu0 %v739
  %945 = vmatprep.subr.bf16.mxu0 0
  %946 = vmatpush1.bf16.msra.mxu0 %v738
  %947 = vmatprep.subr.bf16.mxu0 0
  %948 = vmatpush2.bf16.msra.mxu0 %v753
  %949 = vmatprep.subr.bf16.mxu0 0
  %950 = vmatpush2.bf16.msra.mxu0 %v752
  %951 = vmatprep.subr.bf16.mxu0 0
  %952 = vmatpush2.bf16.msra.mxu0 %v751
  %953 = vmatprep.subr.bf16.mxu0 0
  %954 = vmatpush2.bf16.msra.mxu0 %v750
  %955 = vmatprep.subr.bf16.mxu0 0
  %956 = vmatpush2.bf16.msra.mxu0 %v749
  %957 = vmatprep.subr.bf16.mxu0 0
  %958 = vmatpush2.bf16.msra.mxu0 %v748
  %959 = vmatprep.subr.bf16.mxu0 0
  %960 = vmatpush2.bf16.msra.mxu0 %v747
  %961 = vmatprep.subr.bf16.mxu0 0
  %962 = vmatpush2.bf16.msra.mxu0 %v746
  %963 = vmatprep.mubr.bf16.mxu0 %v389
  %964 = vmatmul.mubr.bf16.gmra.mxu0 %v388
  %v965 = vpop.f32.mrf.mxu0
  %v966 = vadd.f32 %v869, %v965
  %v967 = vpop.f32.mrf.mxu0
  %v968 = vpop.f32.mrf.mxu0
  %v969 = vadd.f32 %v872, %v968
  %v970 = vpop.f32.mrf.mxu0
  %971 = vmatprep.mubr.bf16.mxu0 %v396
  %972 = vmatmul.mubr.bf16.gmra.mxu0 %v395
  %v973 = vpop.f32.mrf.mxu0
  %v974 = vadd.f32 %v877, %v973
  %v975 = vpop.f32.mrf.mxu0
  %v976 = vpop.f32.mrf.mxu0
  %v977 = vadd.f32 %v880, %v976
  %v978 = vpop.f32.mrf.mxu0
  %979 = vmatprep.mubr.bf16.mxu0 %v403
  %980 = vmatmul.mubr.bf16.gmra.mxu0 %v402
  %v981 = vpop.f32.mrf.mxu0
  %v982 = vadd.f32 %v885, %v981
  %v983 = vpop.f32.mrf.mxu0
  %v984 = vpop.f32.mrf.mxu0
  %v985 = vadd.f32 %v888, %v984
  %v986 = vpop.f32.mrf.mxu0
  %987 = vmatprep.mubr.bf16.mxu0 %v410
  %988 = vmatmul.mubr.bf16.gmra.mxu0 %v409
  %v989 = vpop.f32.mrf.mxu0
  %v990 = vadd.f32 %v893, %v989
  %v991 = vpop.f32.mrf.mxu0
  %v992 = vpop.f32.mrf.mxu0
  %v993 = vadd.f32 %v896, %v992
  %v994 = vpop.f32.mrf.mxu0
  %995 = vmatprep.mubr.bf16.mxu0 %v417
  %996 = vmatmul.mubr.bf16.gmra.mxu0 %v416
  %v997 = vpop.f32.mrf.mxu0
  %v998 = vadd.f32 %v901, %v997
  %v999 = vpop.f32.mrf.mxu0
  %v1000 = vpop.f32.mrf.mxu0
  %v1001 = vadd.f32 %v904, %v1000
  %v1002 = vpop.f32.mrf.mxu0
  %1003 = vmatprep.mubr.bf16.mxu0 %v424
  %1004 = vmatmul.mubr.bf16.gmra.mxu0 %v423
  %v1005 = vpop.f32.mrf.mxu0
  %v1006 = vadd.f32 %v909, %v1005
  %v1007 = vpop.f32.mrf.mxu0
  %v1008 = vpop.f32.mrf.mxu0
  %v1009 = vadd.f32 %v912, %v1008
  %v1010 = vpop.f32.mrf.mxu0
  %1011 = vmatprep.mubr.bf16.mxu0 %v431
  %1012 = vmatmul.mubr.bf16.gmra.mxu0 %v430
  %v1013 = vpop.f32.mrf.mxu0
  %v1014 = vadd.f32 %v917, %v1013
  %v1015 = vpop.f32.mrf.mxu0
  %v1016 = vpop.f32.mrf.mxu0
  %v1017 = vadd.f32 %v920, %v1016
  %v1018 = vpop.f32.mrf.mxu0
  %1019 = vmatprep.mubr.bf16.mxu0 %v438
  %1020 = vmatmul.mubr.bf16.gmra.mxu0 %v437
  %v1021 = vpop.f32.mrf.mxu0
  %v1022 = vadd.f32 %v925, %v1021
  %v1023 = vpop.f32.mrf.mxu0
  %v1024 = vpop.f32.mrf.mxu0
  %v1025 = vadd.f32 %v928, %v1024
  %v1026 = vpop.f32.mrf.mxu0
  %1027 = vdwg.mxu0
  %1028 = vmatprep.subr.bf16.mxu0 0
  %1029 = vmatpush1.bf16.msra.mxu0 %v761
  %1030 = vmatprep.subr.bf16.mxu0 0
  %1031 = vmatpush1.bf16.msra.mxu0 %v760
  %1032 = vmatprep.subr.bf16.mxu0 0
  %1033 = vmatpush1.bf16.msra.mxu0 %v759
  %1034 = vmatprep.subr.bf16.mxu0 0
  %1035 = vmatpush1.bf16.msra.mxu0 %v758
  %1036 = vmatprep.subr.bf16.mxu0 0
  %1037 = vmatpush1.bf16.msra.mxu0 %v757
  %1038 = vmatprep.subr.bf16.mxu0 0
  %1039 = vmatpush1.bf16.msra.mxu0 %v756
  %1040 = vmatprep.subr.bf16.mxu0 0
  %1041 = vmatpush1.bf16.msra.mxu0 %v755
  %1042 = vmatprep.subr.bf16.mxu0 0
  %1043 = vmatpush1.bf16.msra.mxu0 %v754
  %1044 = vmatprep.subr.bf16.mxu0 0
  %1045 = vmatpush2.bf16.msra.mxu0 %v769
  %1046 = vmatprep.subr.bf16.mxu0 0
  %1047 = vmatpush2.bf16.msra.mxu0 %v768
  %1048 = vmatprep.subr.bf16.mxu0 0
  %1049 = vmatpush2.bf16.msra.mxu0 %v767
  %1050 = vmatprep.subr.bf16.mxu0 0
  %1051 = vmatpush2.bf16.msra.mxu0 %v766
  %1052 = vmatprep.subr.bf16.mxu0 0
  %1053 = vmatpush2.bf16.msra.mxu0 %v765
  %1054 = vmatprep.subr.bf16.mxu0 0
  %1055 = vmatpush2.bf16.msra.mxu0 %v764
  %1056 = vmatprep.subr.bf16.mxu0 0
  %1057 = vmatpush2.bf16.msra.mxu0 %v763
  %1058 = vmatprep.subr.bf16.mxu0 0
  %1059 = vmatpush2.bf16.msra.mxu0 %v762
  %1060 = vmatprep.mubr.bf16.mxu0 %v391
  %1061 = vmatmul.mubr.bf16.gmra.mxu0 %v390
  %v1062 = vpop.f32.mrf.mxu0
  %v1063 = vadd.f32 %v966, %v1062
  %v1064 = vpop.f32.mrf.mxu0
  %v1065 = vpop.f32.mrf.mxu0
  %v1066 = vadd.f32 %v969, %v1065
  %v1067 = vpop.f32.mrf.mxu0
  %1068 = vmatprep.mubr.bf16.mxu0 %v398
  %1069 = vmatmul.mubr.bf16.gmra.mxu0 %v397
  %v1070 = vpop.f32.mrf.mxu0
  %v1071 = vadd.f32 %v974, %v1070
  %v1072 = vpop.f32.mrf.mxu0
  %v1073 = vpop.f32.mrf.mxu0
  %v1074 = vadd.f32 %v977, %v1073
  %v1075 = vpop.f32.mrf.mxu0
  %1076 = vmatprep.mubr.bf16.mxu0 %v405
  %1077 = vmatmul.mubr.bf16.gmra.mxu0 %v404
  %v1078 = vpop.f32.mrf.mxu0
  %v1079 = vadd.f32 %v982, %v1078
  %v1080 = vpop.f32.mrf.mxu0
  %v1081 = vpop.f32.mrf.mxu0
  %v1082 = vadd.f32 %v985, %v1081
  %v1083 = vpop.f32.mrf.mxu0
  %1084 = vmatprep.mubr.bf16.mxu0 %v412
  %1085 = vmatmul.mubr.bf16.gmra.mxu0 %v411
  %v1086 = vpop.f32.mrf.mxu0
  %v1087 = vadd.f32 %v990, %v1086
  %v1088 = vpop.f32.mrf.mxu0
  %v1089 = vpop.f32.mrf.mxu0
  %v1090 = vadd.f32 %v993, %v1089
  %v1091 = vpop.f32.mrf.mxu0
  %1092 = vmatprep.mubr.bf16.mxu0 %v419
  %1093 = vmatmul.mubr.bf16.gmra.mxu0 %v418
  %v1094 = vpop.f32.mrf.mxu0
  %v1095 = vadd.f32 %v998, %v1094
  %v1096 = vpop.f32.mrf.mxu0
  %v1097 = vpop.f32.mrf.mxu0
  %v1098 = vadd.f32 %v1001, %v1097
  %v1099 = vpop.f32.mrf.mxu0
  %1100 = vmatprep.mubr.bf16.mxu0 %v426
  %1101 = vmatmul.mubr.bf16.gmra.mxu0 %v425
  %v1102 = vpop.f32.mrf.mxu0
  %v1103 = vadd.f32 %v1006, %v1102
  %v1104 = vpop.f32.mrf.mxu0
  %v1105 = vpop.f32.mrf.mxu0
  %v1106 = vadd.f32 %v1009, %v1105
  %v1107 = vpop.f32.mrf.mxu0
  %1108 = vmatprep.mubr.bf16.mxu0 %v433
  %1109 = vmatmul.mubr.bf16.gmra.mxu0 %v432
  %v1110 = vpop.f32.mrf.mxu0
  %v1111 = vadd.f32 %v1014, %v1110
  %v1112 = vpop.f32.mrf.mxu0
  %v1113 = vpop.f32.mrf.mxu0
  %v1114 = vadd.f32 %v1017, %v1113
  %v1115 = vpop.f32.mrf.mxu0
  %1116 = vmatprep.mubr.bf16.mxu0 %v440
  %1117 = vmatmul.mubr.bf16.gmra.mxu0 %v439
  %v1118 = vpop.f32.mrf.mxu0
  %v1119 = vadd.f32 %v1022, %v1118
  %v1120 = vpop.f32.mrf.mxu0
  %v1121 = vpop.f32.mrf.mxu0
  %v1122 = vadd.f32 %v1025, %v1121
  %v1123 = vpop.f32.mrf.mxu0
  %1124 = vdwg.mxu0
  %1125 = vmatprep.subr.bf16.mxu0 0
  %1126 = vmatpush1.bf16.msra.mxu0 %v777
  %1127 = vmatprep.subr.bf16.mxu0 0
  %1128 = vmatpush1.bf16.msra.mxu0 %v776
  %1129 = vmatprep.subr.bf16.mxu0 0
  %1130 = vmatpush1.bf16.msra.mxu0 %v775
  %1131 = vmatprep.subr.bf16.mxu0 0
  %1132 = vmatpush1.bf16.msra.mxu0 %v774
  %1133 = vmatprep.subr.bf16.mxu0 0
  %1134 = vmatpush1.bf16.msra.mxu0 %v773
  %1135 = vmatprep.subr.bf16.mxu0 0
  %1136 = vmatpush1.bf16.msra.mxu0 %v772
  %1137 = vmatprep.subr.bf16.mxu0 0
  %1138 = vmatpush1.bf16.msra.mxu0 %v771
  %1139 = vmatprep.subr.bf16.mxu0 0
  %1140 = vmatpush1.bf16.msra.mxu0 %v770
  %1141 = vmatprep.subr.bf16.mxu0 0
  %1142 = vmatpush2.bf16.msra.mxu0 0
  %1143 = vmatprep.subr.bf16.mxu0 0
  %1144 = vmatpush2.bf16.msra.mxu0 0
  %1145 = vmatprep.subr.bf16.mxu0 0
  %1146 = vmatpush2.bf16.msra.mxu0 0
  %1147 = vmatprep.subr.bf16.mxu0 0
  %1148 = vmatpush2.bf16.msra.mxu0 0
  %1149 = vmatprep.subr.bf16.mxu0 0
  %1150 = vmatpush2.bf16.msra.mxu0 0
  %1151 = vmatprep.subr.bf16.mxu0 0
  %1152 = vmatpush2.bf16.msra.mxu0 0
  %1153 = vmatprep.subr.bf16.mxu0 0
  %1154 = vmatpush2.bf16.msra.mxu0 0
  %1155 = vmatprep.subr.bf16.mxu0 0
  %1156 = vmatpush2.bf16.msra.mxu0 0
  %1157 = vmatprep.mubr.bf16.mxu0 0
  %1158 = vmatmul.mubr.bf16.gmra.mxu0 %v392
  %v1159 = vpop.f32.mrf.mxu0
  %v1160 = vadd.f32 %v1063, %v1159
  %v1161 = vpop.f32.mrf.mxu0
  %v1162 = vpop.f32.mrf.mxu0
  %v1163 = vadd.f32 %v1066, %v1162
  %v1164 = vpop.f32.mrf.mxu0
  %1165 = vmatprep.mubr.bf16.mxu0 0
  %1166 = vmatmul.mubr.bf16.gmra.mxu0 %v399
  %v1167 = vpop.f32.mrf.mxu0
  %v1168 = vadd.f32 %v1071, %v1167
  %v1169 = vpop.f32.mrf.mxu0
  %v1170 = vpop.f32.mrf.mxu0
  %v1171 = vadd.f32 %v1074, %v1170
  %v1172 = vpop.f32.mrf.mxu0
  %1173 = vmatprep.mubr.bf16.mxu0 0
  %1174 = vmatmul.mubr.bf16.gmra.mxu0 %v406
  %v1175 = vpop.f32.mrf.mxu0
  %v1176 = vadd.f32 %v1079, %v1175
  %v1177 = vpop.f32.mrf.mxu0
  %v1178 = vpop.f32.mrf.mxu0
  %v1179 = vadd.f32 %v1082, %v1178
  %v1180 = vpop.f32.mrf.mxu0
  %1181 = vmatprep.mubr.bf16.mxu0 0
  %1182 = vmatmul.mubr.bf16.gmra.mxu0 %v413
  %v1183 = vpop.f32.mrf.mxu0
  %v1184 = vadd.f32 %v1087, %v1183
  %v1185 = vpop.f32.mrf.mxu0
  %v1186 = vpop.f32.mrf.mxu0
  %v1187 = vadd.f32 %v1090, %v1186
  %v1188 = vpop.f32.mrf.mxu0
  %1189 = vmatprep.mubr.bf16.mxu0 0
  %1190 = vmatmul.mubr.bf16.gmra.mxu0 %v420
  %v1191 = vpop.f32.mrf.mxu0
  %v1192 = vadd.f32 %v1095, %v1191
  %v1193 = vpop.f32.mrf.mxu0
  %v1194 = vpop.f32.mrf.mxu0
  %v1195 = vadd.f32 %v1098, %v1194
  %v1196 = vpop.f32.mrf.mxu0
  %1197 = vmatprep.mubr.bf16.mxu0 0
  %1198 = vmatmul.mubr.bf16.gmra.mxu0 %v427
  %v1199 = vpop.f32.mrf.mxu0
  %v1200 = vadd.f32 %v1103, %v1199
  %v1201 = vpop.f32.mrf.mxu0
  %v1202 = vpop.f32.mrf.mxu0
  %v1203 = vadd.f32 %v1106, %v1202
  %v1204 = vpop.f32.mrf.mxu0
  %1205 = vmatprep.mubr.bf16.mxu0 0
  %1206 = vmatmul.mubr.bf16.gmra.mxu0 %v434
  %v1207 = vpop.f32.mrf.mxu0
  %v1208 = vadd.f32 %v1111, %v1207
  %v1209 = vpop.f32.mrf.mxu0
  %v1210 = vpop.f32.mrf.mxu0
  %v1211 = vadd.f32 %v1114, %v1210
  %v1212 = vpop.f32.mrf.mxu0
  %1213 = vmatprep.mubr.bf16.mxu0 0
  %1214 = vmatmul.mubr.bf16.gmra.mxu0 %v441
  %v1215 = vpop.f32.mrf.mxu0
  %v1216 = vadd.f32 %v1119, %v1215
  %v1217 = vpop.f32.mrf.mxu0
  %v1218 = vpop.f32.mrf.mxu0
  %v1219 = vadd.f32 %v1122, %v1218
  %v1220 = vpop.f32.mrf.mxu0
  %1221 = vdwg.mxu0
  %v1222 = vmax.f32 %v1160, 0.0
  %v1223 = vmax.f32 %v1163, 0.0
  %v1224 = vmax.f32 %v1168, 0.0
  %v1225 = vmax.f32 %v1171, 0.0
  %v1226 = vmax.f32 %v1176, 0.0
  %v1227 = vmax.f32 %v1179, 0.0
  %v1228 = vmax.f32 %v1184, 0.0
  %v1229 = vmax.f32 %v1187, 0.0
  %v1230 = vmax.f32 %v1192, 0.0
  %v1231 = vmax.f32 %v1195, 0.0
  %v1232 = vmax.f32 %v1200, 0.0
  %v1233 = vmax.f32 %v1203, 0.0
  %v1234 = vmax.f32 %v1208, 0.0
  %v1235 = vmax.f32 %v1211, 0.0
  %v1236 = vmax.f32 %v1216, 0.0
  %v1237 = vmax.f32 %v1219, 0.0
  %v1238 = vpack.c.bf16 %v1223, %v1222
  %v1239 = vpack.c.bf16 %v1225, %v1224
  %v1240 = vpack.c.bf16 %v1227, %v1226
  %v1241 = vpack.c.bf16 %v1229, %v1228
  %v1242 = vpack.c.bf16 %v1231, %v1230
  %v1243 = vpack.c.bf16 %v1233, %v1232
  %v1244 = vpack.c.bf16 %v1235, %v1234
  %v1245 = vpack.c.bf16 %v1237, %v1236
  %v1246 = vld [vmem:[%s3] sm:$0xf]
  %v1247 = vld [vmem:[%s3 + $0x4] sm:$0xf]
  %v1248 = vld [vmem:[%s3 + $0x8] sm:$0xf]
  %v1249 = vld [vmem:[%s3 + $0xc] sm:$0xf]
  %v1250 = vld [vmem:[%s3 + $0x10] sm:$0xf]
  %v1251 = vld [vmem:[%s3 + $0x14] sm:$0xf]
  %v1252 = vld [vmem:[%s3 + $0x18] sm:$0xf]
  %v1253 = vld [vmem:[%s3 + $0x1c] sm:$0xf]
  %v1254 = vld [vmem:[%s3 + $0x20] sm:$0xf]
  %v1255 = vld [vmem:[%s3 + $0x24] sm:$0xf]
  %v1256 = vld [vmem:[%s3 + $0x28] sm:$0xf]
  %v1257 = vld [vmem:[%s3 + $0x2c] sm:$0xf]
  %v1258 = vld [vmem:[%s3 + $0x30] sm:$0xf]
  %v1259 = vld [vmem:[%s3 + $0x34] sm:$0xf]
  %v1260 = vld [vmem:[%s3 + $0x38] sm:$0xf]
  %v1261 = vld [vmem:[%s3 + $0x3c] sm:$0xf]
  %v1262 = vld [vmem:[%s4] sm:$0x1]
  %v1264 = vlaneseq
  %v1265 = vshrl.u32 %v1264, 7
  %v1266 = vsub.s32 0, %v1265
  %v1267 = vrot.slane %v1262, %v1266
  %v1285 = vunpack.c.l.b16 %v1246
  %v1286 = vunpack.c.l.b16 %v1247
  %v1287 = vunpack.c.l.b16 %v1248
  %v1288 = vunpack.c.l.b16 %v1249
  %v1289 = vunpack.c.l.b16 %v1250
  %v1290 = vunpack.c.l.b16 %v1251
  %v1291 = vunpack.c.l.b16 %v1252
  %v1292 = vunpack.c.l.b16 %v1253
  %v1293 = vunpack.c.l.b16 %v1254
  %v1294 = vunpack.c.l.b16 %v1255
  %v1295 = vunpack.c.l.b16 %v1256
  %v1296 = vunpack.c.l.b16 %v1257
  %v1297 = vunpack.c.l.b16 %v1258
  %v1298 = vunpack.c.l.b16 %v1259
  %v1299 = vunpack.c.l.b16 %v1260
  %v1300 = vunpack.c.l.b16 %v1261
  %v1301 = vpack.c.b16 %v1286, %v1285
  %v1302 = vpack.c.b16 %v1288, %v1287
  %v1303 = vpack.c.b16 %v1290, %v1289
  %v1304 = vpack.c.b16 %v1292, %v1291
  %v1305 = vpack.c.b16 %v1294, %v1293
  %v1306 = vpack.c.b16 %v1296, %v1295
  %v1307 = vpack.c.b16 %v1298, %v1297
  %v1308 = vpack.c.b16 %v1300, %v1299
  %1317 = vmatprep.subr.bf16.mxu0 0
  %1318 = vmatpush1.bf16.msra.mxu0 %v1308
  %1319 = vmatprep.subr.bf16.mxu0 0
  %1320 = vmatpush1.bf16.msra.mxu0 %v1307
  %1321 = vmatprep.subr.bf16.mxu0 0
  %1322 = vmatpush1.bf16.msra.mxu0 %v1306
  %1323 = vmatprep.subr.bf16.mxu0 0
  %1324 = vmatpush1.bf16.msra.mxu0 %v1305
  %1325 = vmatprep.subr.bf16.mxu0 0
  %1326 = vmatpush1.bf16.msra.mxu0 %v1304
  %1327 = vmatprep.subr.bf16.mxu0 0
  %1328 = vmatpush1.bf16.msra.mxu0 %v1303
  %1329 = vmatprep.subr.bf16.mxu0 0
  %1330 = vmatpush1.bf16.msra.mxu0 %v1302
  %1331 = vmatprep.subr.bf16.mxu0 0
  %1332 = vmatpush1.bf16.msra.mxu0 %v1301
  %1333 = vmatprep.subr.bf16.mxu0 0
  %1334 = vmatpush2.bf16.msra.mxu0 0
  %1335 = vmatprep.subr.bf16.mxu0 0
  %1336 = vmatpush2.bf16.msra.mxu0 0
  %1337 = vmatprep.subr.bf16.mxu0 0
  %1338 = vmatpush2.bf16.msra.mxu0 0
  %1339 = vmatprep.subr.bf16.mxu0 0
  %1340 = vmatpush2.bf16.msra.mxu0 0
  %1341 = vmatprep.subr.bf16.mxu0 0
  %1342 = vmatpush2.bf16.msra.mxu0 0
  %1343 = vmatprep.subr.bf16.mxu0 0
  %1344 = vmatpush2.bf16.msra.mxu0 0
  %1345 = vmatprep.subr.bf16.mxu0 0
  %1346 = vmatpush2.bf16.msra.mxu0 0
  %1347 = vmatprep.subr.bf16.mxu0 0
  %1348 = vmatpush2.bf16.msra.mxu0 0
  %1349 = vmatprep.mubr.bf16.mxu0 0
  %1350 = vmatmul.mubr.bf16.gmra.mxu0 %v1238
  %v1351 = vpop.f32.mrf.mxu0
  %v1352 = vadd.f32 %v1267, %v1351
  %v1353 = vpop.f32.mrf.mxu0
  %v1354 = vpop.f32.mrf.mxu0
  %v1355 = vadd.f32 %v1267, %v1354
  %v1356 = vpop.f32.mrf.mxu0
  %1357 = vmatprep.mubr.bf16.mxu0 0
  %1358 = vmatmul.mubr.bf16.gmra.mxu0 %v1239
  %v1359 = vpop.f32.mrf.mxu0
  %v1360 = vadd.f32 %v1267, %v1359
  %v1361 = vpop.f32.mrf.mxu0
  %v1362 = vpop.f32.mrf.mxu0
  %v1363 = vadd.f32 %v1267, %v1362
  %v1364 = vpop.f32.mrf.mxu0
  %1365 = vmatprep.mubr.bf16.mxu0 0
  %1366 = vmatmul.mubr.bf16.gmra.mxu0 %v1240
  %v1367 = vpop.f32.mrf.mxu0
  %v1368 = vadd.f32 %v1267, %v1367
  %v1369 = vpop.f32.mrf.mxu0
  %v1370 = vpop.f32.mrf.mxu0
  %v1371 = vadd.f32 %v1267, %v1370
  %v1372 = vpop.f32.mrf.mxu0
  %1373 = vmatprep.mubr.bf16.mxu0 0
  %1374 = vmatmul.mubr.bf16.gmra.mxu0 %v1241
  %v1375 = vpop.f32.mrf.mxu0
  %v1376 = vadd.f32 %v1267, %v1375
  %v1377 = vpop.f32.mrf.mxu0
  %v1378 = vpop.f32.mrf.mxu0
  %v1379 = vadd.f32 %v1267, %v1378
  %v1380 = vpop.f32.mrf.mxu0
  %1381 = vmatprep.mubr.bf16.mxu0 0
  %1382 = vmatmul.mubr.bf16.gmra.mxu0 %v1242
  %v1383 = vpop.f32.mrf.mxu0
  %v1384 = vadd.f32 %v1267, %v1383
  %v1385 = vpop.f32.mrf.mxu0
  %v1386 = vpop.f32.mrf.mxu0
  %v1387 = vadd.f32 %v1267, %v1386
  %v1388 = vpop.f32.mrf.mxu0
  %1389 = vmatprep.mubr.bf16.mxu0 0
  %1390 = vmatmul.mubr.bf16.gmra.mxu0 %v1243
  %v1391 = vpop.f32.mrf.mxu0
  %v1392 = vadd.f32 %v1267, %v1391
  %v1393 = vpop.f32.mrf.mxu0
  %v1394 = vpop.f32.mrf.mxu0
  %v1395 = vadd.f32 %v1267, %v1394
  %v1396 = vpop.f32.mrf.mxu0
  %1397 = vmatprep.mubr.bf16.mxu0 0
  %1398 = vmatmul.mubr.bf16.gmra.mxu0 %v1244
  %v1399 = vpop.f32.mrf.mxu0
  %v1400 = vadd.f32 %v1267, %v1399
  %v1401 = vpop.f32.mrf.mxu0
  %v1402 = vpop.f32.mrf.mxu0
  %v1403 = vadd.f32 %v1267, %v1402
  %v1404 = vpop.f32.mrf.mxu0
  %1405 = vmatprep.mubr.bf16.mxu0 0
  %1406 = vmatmul.mubr.bf16.gmra.mxu0 %v1245
  %v1407 = vpop.f32.mrf.mxu0
  %v1408 = vadd.f32 %v1267, %v1407
  %v1409 = vpop.f32.mrf.mxu0
  %v1410 = vpop.f32.mrf.mxu0
  %v1411 = vadd.f32 %v1267, %v1410
  %v1412 = vpop.f32.mrf.mxu0
  %1413 = vdwg.mxu0
  %v1414 = vmax.f32 %v1352, 0.0
  %v1415 = vmax.f32 %v1355, 0.0
  %v1416 = vmax.f32 %v1360, 0.0
  %v1417 = vmax.f32 %v1363, 0.0
  %v1418 = vmax.f32 %v1368, 0.0
  %v1419 = vmax.f32 %v1371, 0.0
  %v1420 = vmax.f32 %v1376, 0.0
  %v1421 = vmax.f32 %v1379, 0.0
  %v1422 = vmax.f32 %v1384, 0.0
  %v1423 = vmax.f32 %v1387, 0.0
  %v1424 = vmax.f32 %v1392, 0.0
  %v1425 = vmax.f32 %v1395, 0.0
  %v1426 = vmax.f32 %v1400, 0.0
  %v1427 = vmax.f32 %v1403, 0.0
  %v1428 = vmax.f32 %v1408, 0.0
  %v1429 = vmax.f32 %v1411, 0.0
  %v1430 = vpack.c.bf16 %v1415, %v1414
  %v1431 = vpack.c.bf16 %v1417, %v1416
  %v1432 = vpack.c.bf16 %v1419, %v1418
  %v1433 = vpack.c.bf16 %v1421, %v1420
  %v1434 = vpack.c.bf16 %v1423, %v1422
  %v1435 = vpack.c.bf16 %v1425, %v1424
  %v1436 = vpack.c.bf16 %v1427, %v1426
  %v1437 = vpack.c.bf16 %v1429, %v1428
  %v1438 = vld [vmem:[%s5] sm:$0xf]
  %v1439 = vld [vmem:[%s5 + $0x4] sm:$0xf]
  %v1440 = vld [vmem:[%s5 + $0x8] sm:$0xf]
  %v1441 = vld [vmem:[%s5 + $0xc] sm:$0xf]
  %v1442 = vld [vmem:[%s5 + $0x10] sm:$0xf]
  %v1443 = vld [vmem:[%s5 + $0x14] sm:$0xf]
  %v1444 = vld [vmem:[%s5 + $0x18] sm:$0xf]
  %v1445 = vld [vmem:[%s5 + $0x1c] sm:$0xf]
  %v1446 = vld [vmem:[%s5 + $0x20] sm:$0xf]
  %v1447 = vld [vmem:[%s5 + $0x24] sm:$0xf]
  %v1448 = vld [vmem:[%s5 + $0x28] sm:$0xf]
  %v1449 = vld [vmem:[%s5 + $0x2c] sm:$0xf]
  %v1450 = vld [vmem:[%s5 + $0x30] sm:$0xf]
  %v1451 = vld [vmem:[%s5 + $0x34] sm:$0xf]
  %v1452 = vld [vmem:[%s5 + $0x38] sm:$0xf]
  %v1453 = vld [vmem:[%s5 + $0x3c] sm:$0xf]
  %v1454 = vld [vmem:[%s6] sm:$0x1]
  %v1456 = vlaneseq
  %v1457 = vshrl.u32 %v1456, 7
  %v1458 = vsub.s32 0, %v1457
  %v1459 = vrot.slane %v1454, %v1458
  %v1477 = vunpack.c.l.b16 %v1438
  %v1478 = vunpack.c.l.b16 %v1439
  %v1479 = vunpack.c.l.b16 %v1440
  %v1480 = vunpack.c.l.b16 %v1441
  %v1481 = vunpack.c.l.b16 %v1442
  %v1482 = vunpack.c.l.b16 %v1443
  %v1483 = vunpack.c.l.b16 %v1444
  %v1484 = vunpack.c.l.b16 %v1445
  %v1485 = vunpack.c.l.b16 %v1446
  %v1486 = vunpack.c.l.b16 %v1447
  %v1487 = vunpack.c.l.b16 %v1448
  %v1488 = vunpack.c.l.b16 %v1449
  %v1489 = vunpack.c.l.b16 %v1450
  %v1490 = vunpack.c.l.b16 %v1451
  %v1491 = vunpack.c.l.b16 %v1452
  %v1492 = vunpack.c.l.b16 %v1453
  %v1493 = vpack.c.b16 %v1478, %v1477
  %v1494 = vpack.c.b16 %v1480, %v1479
  %v1495 = vpack.c.b16 %v1482, %v1481
  %v1496 = vpack.c.b16 %v1484, %v1483
  %v1497 = vpack.c.b16 %v1486, %v1485
  %v1498 = vpack.c.b16 %v1488, %v1487
  %v1499 = vpack.c.b16 %v1490, %v1489
  %v1500 = vpack.c.b16 %v1492, %v1491
  %1509 = vmatprep.subr.bf16.mxu0 0
  %1510 = vmatpush1.bf16.msra.mxu0 %v1500
  %1511 = vmatprep.subr.bf16.mxu0 0
  %1512 = vmatpush1.bf16.msra.mxu0 %v1499
  %1513 = vmatprep.subr.bf16.mxu0 0
  %1514 = vmatpush1.bf16.msra.mxu0 %v1498
  %1515 = vmatprep.subr.bf16.mxu0 0
  %1516 = vmatpush1.bf16.msra.mxu0 %v1497
  %1517 = vmatprep.subr.bf16.mxu0 0
  %1518 = vmatpush1.bf16.msra.mxu0 %v1496
  %1519 = vmatprep.subr.bf16.mxu0 0
  %1520 = vmatpush1.bf16.msra.mxu0 %v1495
  %1521 = vmatprep.subr.bf16.mxu0 0
  %1522 = vmatpush1.bf16.msra.mxu0 %v1494
  %1523 = vmatprep.subr.bf16.mxu0 0
  %1524 = vmatpush1.bf16.msra.mxu0 %v1493
  %1525 = vmatprep.subr.bf16.mxu0 0
  %1526 = vmatpush2.bf16.msra.mxu0 0
  %1527 = vmatprep.subr.bf16.mxu0 0
  %1528 = vmatpush2.bf16.msra.mxu0 0
  %1529 = vmatprep.subr.bf16.mxu0 0
  %1530 = vmatpush2.bf16.msra.mxu0 0
  %1531 = vmatprep.subr.bf16.mxu0 0
  %1532 = vmatpush2.bf16.msra.mxu0 0
  %1533 = vmatprep.subr.bf16.mxu0 0
  %1534 = vmatpush2.bf16.msra.mxu0 0
  %1535 = vmatprep.subr.bf16.mxu0 0
  %1536 = vmatpush2.bf16.msra.mxu0 0
  %1537 = vmatprep.subr.bf16.mxu0 0
  %1538 = vmatpush2.bf16.msra.mxu0 0
  %1539 = vmatprep.subr.bf16.mxu0 0
  %1540 = vmatpush2.bf16.msra.mxu0 0
  %1541 = vmatprep.mubr.bf16.mxu0 0
  %1542 = vmatmul.mubr.bf16.gmra.mxu0 %v1430
  %v1543 = vpop.f32.mrf.mxu0
  %v1544 = vadd.f32 %v1459, %v1543
  %v1545 = vpop.f32.mrf.mxu0
  %v1546 = vpop.f32.mrf.mxu0
  %v1547 = vadd.f32 %v1459, %v1546
  %v1548 = vpop.f32.mrf.mxu0
  %1549 = vmatprep.mubr.bf16.mxu0 0
  %1550 = vmatmul.mubr.bf16.gmra.mxu0 %v1431
  %v1551 = vpop.f32.mrf.mxu0
  %v1552 = vadd.f32 %v1459, %v1551
  %v1553 = vpop.f32.mrf.mxu0
  %v1554 = vpop.f32.mrf.mxu0
  %v1555 = vadd.f32 %v1459, %v1554
  %v1556 = vpop.f32.mrf.mxu0
  %1557 = vmatprep.mubr.bf16.mxu0 0
  %1558 = vmatmul.mubr.bf16.gmra.mxu0 %v1432
  %v1559 = vpop.f32.mrf.mxu0
  %v1560 = vadd.f32 %v1459, %v1559
  %v1561 = vpop.f32.mrf.mxu0
  %v1562 = vpop.f32.mrf.mxu0
  %v1563 = vadd.f32 %v1459, %v1562
  %v1564 = vpop.f32.mrf.mxu0
  %1565 = vmatprep.mubr.bf16.mxu0 0
  %1566 = vmatmul.mubr.bf16.gmra.mxu0 %v1433
  %v1567 = vpop.f32.mrf.mxu0
  %v1568 = vadd.f32 %v1459, %v1567
  %v1569 = vpop.f32.mrf.mxu0
  %v1570 = vpop.f32.mrf.mxu0
  %v1571 = vadd.f32 %v1459, %v1570
  %v1572 = vpop.f32.mrf.mxu0
  %1573 = vmatprep.mubr.bf16.mxu0 0
  %1574 = vmatmul.mubr.bf16.gmra.mxu0 %v1434
  %v1575 = vpop.f32.mrf.mxu0
  %v1576 = vadd.f32 %v1459, %v1575
  %v1577 = vpop.f32.mrf.mxu0
  %v1578 = vpop.f32.mrf.mxu0
  %v1579 = vadd.f32 %v1459, %v1578
  %v1580 = vpop.f32.mrf.mxu0
  %1581 = vmatprep.mubr.bf16.mxu0 0
  %1582 = vmatmul.mubr.bf16.gmra.mxu0 %v1435
  %v1583 = vpop.f32.mrf.mxu0
  %v1584 = vadd.f32 %v1459, %v1583
  %v1585 = vpop.f32.mrf.mxu0
  %v1586 = vpop.f32.mrf.mxu0
  %v1587 = vadd.f32 %v1459, %v1586
  %v1588 = vpop.f32.mrf.mxu0
  %1589 = vmatprep.mubr.bf16.mxu0 0
  %1590 = vmatmul.mubr.bf16.gmra.mxu0 %v1436
  %v1591 = vpop.f32.mrf.mxu0
  %v1592 = vadd.f32 %v1459, %v1591
  %v1593 = vpop.f32.mrf.mxu0
  %v1594 = vpop.f32.mrf.mxu0
  %v1595 = vadd.f32 %v1459, %v1594
  %v1596 = vpop.f32.mrf.mxu0
  %1597 = vmatprep.mubr.bf16.mxu0 0
  %1598 = vmatmul.mubr.bf16.gmra.mxu0 %v1437
  %v1599 = vpop.f32.mrf.mxu0
  %v1600 = vadd.f32 %v1459, %v1599
  %v1601 = vpop.f32.mrf.mxu0
  %v1602 = vpop.f32.mrf.mxu0
  %v1603 = vadd.f32 %v1459, %v1602
  %v1604 = vpop.f32.mrf.mxu0
  %1605 = vdwg.mxu0
  %1606 = vmax.xlane.f32.xlu0 %v1544
  %v1607 = vpop.xlane.xlu0 %1606
  %1608 = vmax.xlane.f32.xlu0 %v1547
  %v1609 = vpop.xlane.xlu0 %1608
  %1610 = vmax.xlane.f32.xlu0 %v1552
  %v1611 = vpop.xlane.xlu0 %1610
  %1612 = vmax.xlane.f32.xlu0 %v1555
  %v1613 = vpop.xlane.xlu0 %1612
  %1614 = vmax.xlane.f32.xlu0 %v1560
  %v1615 = vpop.xlane.xlu0 %1614
  %1616 = vmax.xlane.f32.xlu0 %v1563
  %v1617 = vpop.xlane.xlu0 %1616
  %1618 = vmax.xlane.f32.xlu0 %v1568
  %v1619 = vpop.xlane.xlu0 %1618
  %1620 = vmax.xlane.f32.xlu0 %v1571
  %v1621 = vpop.xlane.xlu0 %1620
  %1622 = vmax.xlane.f32.xlu0 %v1576
  %v1623 = vpop.xlane.xlu0 %1622
  %1624 = vmax.xlane.f32.xlu0 %v1579
  %v1625 = vpop.xlane.xlu0 %1624
  %1626 = vmax.xlane.f32.xlu0 %v1584
  %v1627 = vpop.xlane.xlu0 %1626
  %1628 = vmax.xlane.f32.xlu0 %v1587
  %v1629 = vpop.xlane.xlu0 %1628
  %1630 = vmax.xlane.f32.xlu0 %v1592
  %v1631 = vpop.xlane.xlu0 %1630
  %1632 = vmax.xlane.f32.xlu0 %v1595
  %v1633 = vpop.xlane.xlu0 %1632
  %1634 = vmax.xlane.f32.xlu0 %v1600
  %v1635 = vpop.xlane.xlu0 %1634
  %1636 = vmax.xlane.f32.xlu0 %v1603
  %v1637 = vpop.xlane.xlu0 %1636
  %v1638 = vsub.f32 %v1544, %v1607
  %v1639 = vsub.f32 %v1547, %v1609
  %v1640 = vsub.f32 %v1552, %v1611
  %v1641 = vsub.f32 %v1555, %v1613
  %v1642 = vsub.f32 %v1560, %v1615
  %v1643 = vsub.f32 %v1563, %v1617
  %v1644 = vsub.f32 %v1568, %v1619
  %v1645 = vsub.f32 %v1571, %v1621
  %v1646 = vsub.f32 %v1576, %v1623
  %v1647 = vsub.f32 %v1579, %v1625
  %v1648 = vsub.f32 %v1584, %v1627
  %v1649 = vsub.f32 %v1587, %v1629
  %v1650 = vsub.f32 %v1592, %v1631
  %v1651 = vsub.f32 %v1595, %v1633
  %v1652 = vsub.f32 %v1600, %v1635
  %v1653 = vsub.f32 %v1603, %v1637
  %v1654 = vmul.f32 %v1638, 1.442695
  %v1655 = vpow.pop %v1654
  %v1656 = vmul.f32 %v1639, 1.442695
  %v1657 = vpow.pop %v1656
  %v1658 = vmul.f32 %v1640, 1.442695
  %v1659 = vpow.pop %v1658
  %v1660 = vmul.f32 %v1641, 1.442695
  %v1661 = vpow.pop %v1660
  %v1662 = vmul.f32 %v1642, 1.442695
  %v1663 = vpow.pop %v1662
  %v1664 = vmul.f32 %v1643, 1.442695
  %v1665 = vpow.pop %v1664
  %v1666 = vmul.f32 %v1644, 1.442695
  %v1667 = vpow.pop %v1666
  %v1668 = vmul.f32 %v1645, 1.442695
  %v1669 = vpow.pop %v1668
  %v1670 = vmul.f32 %v1646, 1.442695
  %v1671 = vpow.pop %v1670
  %v1672 = vmul.f32 %v1647, 1.442695
  %v1673 = vpow.pop %v1672
  %v1674 = vmul.f32 %v1648, 1.442695
  %v1675 = vpow.pop %v1674
  %v1676 = vmul.f32 %v1649, 1.442695
  %v1677 = vpow.pop %v1676
  %v1678 = vmul.f32 %v1650, 1.442695
  %v1679 = vpow.pop %v1678
  %v1680 = vmul.f32 %v1651, 1.442695
  %v1681 = vpow.pop %v1680
  %v1682 = vmul.f32 %v1652, 1.442695
  %v1683 = vpow.pop %v1682
  %v1684 = vmul.f32 %v1653, 1.442695
  %v1685 = vpow.pop %v1684
  %1686 = vadd.xlane.f32.xlu0 %v1655
  %v1687 = vpop.xlane.xlu0 %1686
  %1688 = vadd.xlane.f32.xlu0 %v1657
  %v1689 = vpop.xlane.xlu0 %1688
  %1690 = vadd.xlane.f32.xlu0 %v1659
  %v1691 = vpop.xlane.xlu0 %1690
  %1692 = vadd.xlane.f32.xlu0 %v1661
  %v1693 = vpop.xlane.xlu0 %1692
  %1694 = vadd.xlane.f32.xlu0 %v1663
  %v1695 = vpop.xlane.xlu0 %1694
  %1696 = vadd.xlane.f32.xlu0 %v1665
  %v1697 = vpop.xlane.xlu0 %1696
  %1698 = vadd.xlane.f32.xlu0 %v1667
  %v1699 = vpop.xlane.xlu0 %1698
  %1700 = vadd.xlane.f32.xlu0 %v1669
  %v1701 = vpop.xlane.xlu0 %1700
  %1702 = vadd.xlane.f32.xlu0 %v1671
  %v1703 = vpop.xlane.xlu0 %1702
  %1704 = vadd.xlane.f32.xlu0 %v1673
  %v1705 = vpop.xlane.xlu0 %1704
  %1706 = vadd.xlane.f32.xlu0 %v1675
  %v1707 = vpop.xlane.xlu0 %1706
  %1708 = vadd.xlane.f32.xlu0 %v1677
  %v1709 = vpop.xlane.xlu0 %1708
  %1710 = vadd.xlane.f32.xlu0 %v1679
  %v1711 = vpop.xlane.xlu0 %1710
  %1712 = vadd.xlane.f32.xlu0 %v1681
  %v1713 = vpop.xlane.xlu0 %1712
  %1714 = vadd.xlane.f32.xlu0 %v1683
  %v1715 = vpop.xlane.xlu0 %1714
  %1716 = vadd.xlane.f32.xlu0 %v1685
  %v1717 = vpop.xlane.xlu0 %1716
  %v1718 = vlog2.pop %v1687
  %v1719 = vmul.f32 %v1718, 0.6931472
  %v1720 = vlog2.pop %v1689
  %v1721 = vmul.f32 %v1720, 0.6931472
  %v1722 = vlog2.pop %v1691
  %v1723 = vmul.f32 %v1722, 0.6931472
  %v1724 = vlog2.pop %v1693
  %v1725 = vmul.f32 %v1724, 0.6931472
  %v1726 = vlog2.pop %v1695
  %v1727 = vmul.f32 %v1726, 0.6931472
  %v1728 = vlog2.pop %v1697
  %v1729 = vmul.f32 %v1728, 0.6931472
  %v1730 = vlog2.pop %v1699
  %v1731 = vmul.f32 %v1730, 0.6931472
  %v1732 = vlog2.pop %v1701
  %v1733 = vmul.f32 %v1732, 0.6931472
  %v1734 = vlog2.pop %v1703
  %v1735 = vmul.f32 %v1734, 0.6931472
  %v1736 = vlog2.pop %v1705
  %v1737 = vmul.f32 %v1736, 0.6931472
  %v1738 = vlog2.pop %v1707
  %v1739 = vmul.f32 %v1738, 0.6931472
  %v1740 = vlog2.pop %v1709
  %v1741 = vmul.f32 %v1740, 0.6931472
  %v1742 = vlog2.pop %v1711
  %v1743 = vmul.f32 %v1742, 0.6931472
  %v1744 = vlog2.pop %v1713
  %v1745 = vmul.f32 %v1744, 0.6931472
  %v1746 = vlog2.pop %v1715
  %v1747 = vmul.f32 %v1746, 0.6931472
  %v1748 = vlog2.pop %v1717
  %v1749 = vmul.f32 %v1748, 0.6931472
  %v1750 = vsub.f32 %v1638, %v1719
  %v1751 = vsub.f32 %v1639, %v1721
  %v1752 = vsub.f32 %v1640, %v1723
  %v1753 = vsub.f32 %v1641, %v1725
  %v1754 = vsub.f32 %v1642, %v1727
  %v1755 = vsub.f32 %v1643, %v1729
  %v1756 = vsub.f32 %v1644, %v1731
  %v1757 = vsub.f32 %v1645, %v1733
  %v1758 = vsub.f32 %v1646, %v1735
  %v1759 = vsub.f32 %v1647, %v1737
  %v1760 = vsub.f32 %v1648, %v1739
  %v1761 = vsub.f32 %v1649, %v1741
  %v1762 = vsub.f32 %v1650, %v1743
  %v1763 = vsub.f32 %v1651, %v1745
  %v1764 = vsub.f32 %v1652, %v1747
  %v1765 = vsub.f32 %v1653, %v1749
  %1766 = vst [vmem:[%s7] sm:$0xff] %v1750
  %1767 = vst [vmem:[%s7 + $0x8] sm:$0xff] %v1751
  %1768 = vst [vmem:[%s7 + $0x10] sm:$0xff] %v1752
  %1769 = vst [vmem:[%s7 + $0x18] sm:$0xff] %v1753
  %1770 = vst [vmem:[%s7 + $0x20] sm:$0xff] %v1754
  %1771 = vst [vmem:[%s7 + $0x28] sm:$0xff] %v1755
  %1772 = vst [vmem:[%s7 + $0x30] sm:$0xff] %v1756
  %1773 = vst [vmem:[%s7 + $0x38] sm:$0xff] %v1757
  %1774 = vst [vmem:[%s7 + $0x40] sm:$0xff] %v1758
  %1775 = vst [vmem:[%s7 + $0x48] sm:$0xff] %v1759
  %1776 = vst [vmem:[%s7 + $0x50] sm:$0xff] %v1760
  %1777 = vst [vmem:[%s7 + $0x58] sm:$0xff] %v1761
  %1778 = vst [vmem:[%s7 + $0x60] sm:$0xff] %v1762
  %1779 = vst [vmem:[%s7 + $0x68] sm:$0xff] %v1763
  %1780 = vst [vmem:[%s7 + $0x70] sm:$0xff] %v1764
  %1781 = vst [vmem:[%s7 + $0x78] sm:$0xff] %v1765
  // Predicated region
  $region30: #{mlp_forward.1} parent=0 // pred_check
    _
  $region31: #{mlp_forward.1} parent=0 // pred_check_branch
    %1783 = sbr.rel (0) target = $region33
  $region32: #{mlp_forward.1} parent=0 // pred_region
    _
  $region33: #{mlp_forward.1} parent=0 // pred_fallthru
    _
  // Predicated region
  $region34: #{mlp_forward.1} parent=0 // pred_check
    _
  $region35: #{mlp_forward.1} parent=0 // pred_check_branch
    %1785 = sbr.rel (0) target = $region37
  $region36: #{mlp_forward.1} parent=0 // pred_region
    _
  $region37: #{mlp_forward.1} parent=0 // pred_fallthru
    _

</llo_original>
